<compile_context>
chip_gen: v5e
topology: v5e:2x2
jax: 0.10.0
libtpu: 0.0.40
codegen_flags: <defaults>
</compile_context>

<pallas_src>
import math

import jax
import jax.numpy as jnp
from jax.experimental import pallas as pl
from jax.experimental.pallas import tpu as pltpu

_SQRT_2_OVER_PI = math.sqrt(2.0 / math.pi)


def _gelu_tanh(x):
    # gelu(x) = 0.5 * x * (1 + tanh(sqrt(2/pi) * (x + 0.044715 * x^3)))
    return 0.5 * x * (1.0 + jnp.tanh(_SQRT_2_OVER_PI * (x + 0.044715 * x * x * x)))


def _pooling_ffn_kernel(
    m_ref,      # (TB, L)    f32, 1.0 = padded position
    x_ref,      # (TB, L, D) bf16
    e_ref,      # (H, D)     f32  head -> column expansion (E[h, h*dph+d] = 1)
    wk_ref,     # (D, H)     bf16 linear_keys.weight.T
    bk_ref,     # (1, H)     f32
    wv_ref,     # (D, D)     bf16 linear_values.weight.T
    bv_ref,     # (1, D)     f32
    wo_ref,     # (D, D)     bf16 final_linear weight, "unshape"-permuted then transposed
    bo_ref,     # (1, D)     f32
    g_ref,      # (1, D)     f32  LayerNorm gamma
    beta_ref,   # (1, D)     f32  LayerNorm beta
    w1_ref,     # (D, F)     bf16 w_1.weight.T
    b1_ref,     # (1, F)     f32
    w2_ref,     # (F, D)     bf16 w_2.weight.T
    b2_ref,     # (1, D)     f32
    o_ref,      # (TB, D)    f32
):
    TB, L, D = x_ref.shape
    H = wk_ref.shape[1]

    # --- MultiHeadedPooling: projections as two big MXU matmuls (M = TB*L, bf16 in, f32 acc) ---
    x2 = x_ref[...].reshape(TB * L, D)                                             # bf16
    scores2 = jnp.dot(x2, wk_ref[...], preferred_element_type=jnp.float32) + bk_ref[...]  # (TB*L, H)
    vals2 = jnp.dot(x2, wv_ref[...], preferred_element_type=jnp.float32) + bv_ref[...]    # (TB*L, D)

    # masked softmax over L, per batch row & head (f32 throughout)
    scores = scores2.reshape(TB, L, H)
    pad = m_ref[...][:, :, None] > 0.5                                             # (TB, L, 1)
    scores = jnp.where(pad, jnp.float32(-1e18), scores)                            # masked_fill
    smax = jnp.max(scores, axis=1, keepdims=True)                                  # (TB, 1, H)
    p = jnp.exp(scores - smax)
    inv_denom = pl.reciprocal(jnp.sum(p, axis=1, keepdims=True), approx=True)      # EUP
    attn = p * inv_denom                                                           # (TB, L, H)
    # TODO(synk): attention-dropout / output-dropout omitted (eval mode => identity).

    # Expand per-head attention over that head's dim_per_head columns (tiny MXU matmul
    # that keeps the (.., D) lane-dense layout), weight the values, then reduce over L
    # with a plain vector-add accumulation (filler under the MXU-bound projections):
    #   context[b, h*dph+d] = sum_l attn[b, l, h] * vals[b, l, h*dph+d]
    attn2 = attn.reshape(TB * L, H)
    attn_exp2 = jnp.dot(attn2, e_ref[...], preferred_element_type=jnp.float32)     # (TB*L, D)
    prod = (attn_exp2 * vals2).reshape(TB, L, D)                                   # f32
    context = jnp.sum(prod, axis=1)                                                # (TB, D)

    # final_linear (weight already permuted for the PyTorch "unshape" interleave)
    pooled = jnp.dot(context.astype(jnp.bfloat16), wo_ref[...],
                     preferred_element_type=jnp.float32) + bo_ref[...]             # (TB, D)

    # --- PositionwiseFeedForward (pre-LayerNorm, gelu, residual) ---
    mu = jnp.mean(pooled, axis=-1, keepdims=True)
    var = jnp.mean((pooled - mu) ** 2, axis=-1, keepdims=True)
    ln = (pooled - mu) * jax.lax.rsqrt(var + 1e-6) * g_ref[...] + beta_ref[...]

    h1 = jnp.dot(ln.astype(jnp.bfloat16), w1_ref[...],
                 preferred_element_type=jnp.float32) + b1_ref[...]                 # (TB, F)
    h1 = _gelu_tanh(h1)
    ffn = jnp.dot(h1.astype(jnp.bfloat16), w2_ref[...],
                  preferred_element_type=jnp.float32) + b2_ref[...]                # (TB, D)

    o_ref[...] = ffn + pooled


def transformer_pooling_layer(x, mask_bool, params, heads, *, block_b=128):
    """x: (B, L, D) float32, mask_bool: (B, L) bool (True = pad). Returns (B, D) float32.

    block_b: batch rows per grid step. Use ~256 on v6e, ~128 on v5e/v7x (v7x has 64 MiB VMEM
    and 2 TensorCores, so keep >= 2 grid steps).
    """
    B, L, D = x.shape
    assert D % heads == 0
    dph = D // heads
    F = params["w1"].shape[0]

    # ---- batch tiling (pad B up to a multiple of the batch block if needed) ----
    if B <= block_b:
        TB, Bp = B, B
    else:
        assert block_b % 8 == 0, "block_b must be a multiple of 8 when B > block_b"
        TB = block_b
        Bp = pl.cdiv(B, TB) * TB

    mask_f = mask_bool.astype(jnp.float32)
    x_p = x
    if Bp != B:
        x_p = jnp.pad(x, ((0, Bp - B), (0, 0), (0, 0)))
        mask_f = jnp.pad(mask_f, ((0, Bp - B), (0, 0)), constant_values=1.0)

    # ---- glue: parameter re-layout (no compute); weights -> bf16, pointwise params stay f32 ----
    x_bf = x_p.astype(jnp.bfloat16)

    # E[h, h*dph + d] = 1 (kept f32: attention weights stay in f32)
    e_mat = (jnp.arange(D)[None, :] // dph == jnp.arange(heads)[:, None]).astype(jnp.float32)

    # "unshape" interleave: pooled_interleaved[d*H + h] = context[h, d]
    # fold into final_linear: Wo_perm[:, h*dph + d] = Wo[:, d*H + h]
    perm = (jnp.arange(dph)[None, :] * heads + jnp.arange(heads)[:, None]).reshape(-1)
    wo_perm_t = params["wo"][:, perm].T.astype(jnp.bfloat16)     # (D, D)

    wk_t = params["wk"].T.astype(jnp.bfloat16)                   # (D, H)
    wv_t = params["wv"].T.astype(jnp.bfloat16)                   # (D, D)
    w1_t = params["w1"].T.astype(jnp.bfloat16)                   # (D, F)
    w2_t = params["w2"].T.astype(jnp.bfloat16)                   # (F, D)

    bk = params["bk"].reshape(1, heads).astype(jnp.float32)
    bv = params["bv"].reshape(1, D).astype(jnp.float32)
    bo = params["bo"].reshape(1, D).astype(jnp.float32)
    gamma = params["ln_g"].reshape(1, D).astype(jnp.float32)
    beta = params["ln_b"].reshape(1, D).astype(jnp.float32)
    b1 = params["b1"].reshape(1, F).astype(jnp.float32)
    b2 = params["b2"].reshape(1, D).astype(jnp.float32)

    # ---- VMEM budget (inputs/out are double-buffered by the pipeline) ----
    bf2, f4 = 2, 4
    w_bytes = (D * heads + 2 * D * D + 2 * D * F) * bf2 + heads * D * f4
    b_bytes = (heads + 5 * D + F) * f4
    io_bytes = TB * L * D * bf2 + TB * L * f4 + TB * D * f4
    tmp_bytes = (TB * L * (4 * heads + 3 * D) + TB * (6 * D + 2 * F)) * f4
    vmem_limit = int(2 * (w_bytes + b_bytes + io_bytes) * 1.25 + tmp_bytes)
    vmem_limit = min(max(vmem_limit, 16 * 2**20), 64 * 2**20)

    full = lambda shape: pl.BlockSpec(shape, lambda b: (0,) * len(shape))

    out = pl.pallas_call(
        _pooling_ffn_kernel,
        out_shape=jax.ShapeDtypeStruct((Bp, D), jnp.float32),
        grid=(Bp // TB,),
        in_specs=[
            pl.BlockSpec((TB, L), lambda b: (b, 0)),          # mask (lane-dense, batched)
            pl.BlockSpec((TB, L, D), lambda b: (b, 0, 0)),    # x (bf16)
            full((heads, D)),                                 # E
            full((D, heads)), full((1, heads)),               # keys
            full((D, D)), full((1, D)),                       # values
            full((D, D)), full((1, D)),                       # final_linear (permuted)
            full((1, D)), full((1, D)),                       # layernorm gamma/beta
            full((D, F)), full((1, F)),                       # w_1
            full((F, D)), full((1, D)),                       # w_2
        ],
        out_specs=pl.BlockSpec((TB, D), lambda b: (b, 0)),    # dense (TB, D) stores
        compiler_params=pltpu.CompilerParams(
            dimension_semantics=("parallel",),
            vmem_limit_bytes=vmem_limit,
        ),
    )(mask_f, x_bf, e_mat, wk_t, bk, wv_t, bv, wo_perm_t, bo, gamma, beta, w1_t, b1, w2_t, b2)

    return out[:B]


def reference_forward(x, mask_bool, params, heads):
    """Pure-JAX f32 mirror of the PyTorch forward (eval mode)."""
    B, L, D = x.shape
    dph = D // heads
    scores = x @ params["wk"].T + params["bk"]                       # (B, L, H)
    vals = x @ params["wv"].T + params["bv"]                         # (B, L, D)
    scores = jnp.transpose(scores, (0, 2, 1))                        # (B, H, L)
    value = jnp.transpose(vals.reshape(B, L, heads, dph), (0, 2, 1, 3))  # (B, H, L, dph)
    scores = jnp.where(mask_bool[:, None, :], jnp.float32(-1e18), scores)
    attn = jax.nn.softmax(scores, axis=-1)
    context = jnp.sum(attn[..., None] * value, axis=-2)              # (B, H, dph)
    context = jnp.transpose(context, (0, 2, 1)).reshape(B, D)        # unshape (interleaved)
    out1 = context @ params["wo"].T + params["bo"]
    mu = out1.mean(-1, keepdims=True)
    var = ((out1 - mu) ** 2).mean(-1, keepdims=True)
    ln = (out1 - mu) / jnp.sqrt(var + 1e-6) * params["ln_g"] + params["ln_b"]
    h1 = _gelu_tanh(ln @ params["w1"].T + params["b1"])
    ffn = h1 @ params["w2"].T + params["b2"]
    return ffn + out1


def make_params(key, d_model, heads, d_ff):
    ks = jax.random.split(key, 8)
    s_in = 1.0 / math.sqrt(d_model)
    s_ff = 1.0 / math.sqrt(d_ff)
    return {
        "wk": jax.random.normal(ks[0], (heads, d_model), jnp.float32) * s_in,
        "bk": jax.random.normal(ks[1], (heads,), jnp.float32) * 0.01,
        "wv": jax.random.normal(ks[2], (d_model, d_model), jnp.float32) * s_in,
        "bv": jax.random.normal(ks[3], (d_model,), jnp.float32) * 0.01,
        "wo": jax.random.normal(ks[4], (d_model, d_model), jnp.float32) * s_in,
        "bo": jax.random.normal(ks[5], (d_model,), jnp.float32) * 0.01,
        "ln_g": jnp.ones((d_model,), jnp.float32),
        "ln_b": jnp.zeros((d_model,), jnp.float32),
        "w1": jax.random.normal(ks[6], (d_ff, d_model), jnp.float32) * s_in,
        "b1": jnp.zeros((d_ff,), jnp.float32),
        "w2": jax.random.normal(ks[7], (d_model, d_ff), jnp.float32) * s_ff,
        "b2": jnp.zeros((d_model,), jnp.float32),
    }


if __name__ == "__main__":
    # Small demo shapes; B=16 with block_b=8 gives a 2-step "parallel" grid (both v7x TCs busy).
    B, L, d_model, heads, d_ff = 16, 8, 32, 4, 64

    key = jax.random.PRNGKey(0)
    k_x, k_len, k_p = jax.random.split(key, 3)
    x = jax.random.normal(k_x, (B, L, d_model), jnp.float32)
    # mask: True == padded position (random sequence lengths in [1, L])
    lengths = jax.random.randint(k_len, (B,), 1, L + 1)
    mask_bool = jnp.arange(L)[None, :] >= lengths[:, None]           # (B, L) bool

    params = make_params(k_p, d_model, heads, d_ff)

    out = transformer_pooling_layer(x, mask_bool, params, heads, block_b=8)
    out = jax.block_until_ready(out)

    ref = reference_forward(x, mask_bool, params, heads)
    assert out.shape == (B, d_model)
    # bf16 matmuls with f32 accumulation (+ approx reciprocal in the softmax) vs a
    # pure-f32 reference -> a few e-3 expected error.
    assert jnp.allclose(out, ref, atol=3e-2, rtol=3e-2), (
        f"max abs err {jnp.max(jnp.abs(out - ref))}"
    )
    print("KERNEL_OK")
</pallas_src>

<mosaic_0001>
module attributes {stable_mosaic.version = 11 : i64} {
  func.func @_pooling_ffn_kernel(%arg0: i32, %arg1: memref<8x8xf32, #tpu.memory_space<vmem>>, %arg2: memref<8x8x32xbf16, #tpu.memory_space<vmem>>, %arg3: memref<4x32xf32, #tpu.memory_space<vmem>>, %arg4: memref<32x4xbf16, #tpu.memory_space<vmem>>, %arg5: memref<1x4xf32, #tpu.memory_space<vmem>>, %arg6: memref<32x32xbf16, #tpu.memory_space<vmem>>, %arg7: memref<1x32xf32, #tpu.memory_space<vmem>>, %arg8: memref<32x32xbf16, #tpu.memory_space<vmem>>, %arg9: memref<1x32xf32, #tpu.memory_space<vmem>>, %arg10: memref<1x32xf32, #tpu.memory_space<vmem>>, %arg11: memref<1x32xf32, #tpu.memory_space<vmem>>, %arg12: memref<32x64xbf16, #tpu.memory_space<vmem>>, %arg13: memref<1x64xf32, #tpu.memory_space<vmem>>, %arg14: memref<64x32xbf16, #tpu.memory_space<vmem>>, %arg15: memref<1x32xf32, #tpu.memory_space<vmem>>, %arg16: memref<8x32xf32, #tpu.memory_space<vmem>>) attributes {dimension_semantics = [#tpu.dimension_semantics<parallel>], iteration_bounds = array<i64: 2>, scalar_prefetch = 0 : i64, scratch_operands = 0 : i64, tpu.core_type = #tpu.core_type<tc>, window_params = [{transform_indices = @transform_0, window_bounds = array<i64: 8, 8>}, {transform_indices = @transform_1, window_bounds = array<i64: 8, 8, 32>}, {pipeline_mode = #tpu.pipeline_mode<synchronous>, transform_indices = @transform_2, window_bounds = array<i64: 4, 32>}, {pipeline_mode = #tpu.pipeline_mode<synchronous>, transform_indices = @transform_3, window_bounds = array<i64: 32, 4>}, {pipeline_mode = #tpu.pipeline_mode<synchronous>, transform_indices = @transform_4, window_bounds = array<i64: 1, 4>}, {pipeline_mode = #tpu.pipeline_mode<synchronous>, transform_indices = @transform_5, window_bounds = array<i64: 32, 32>}, {pipeline_mode = #tpu.pipeline_mode<synchronous>, transform_indices = @transform_6, window_bounds = array<i64: 1, 32>}, {pipeline_mode = #tpu.pipeline_mode<synchronous>, transform_indices = @transform_7, window_bounds = array<i64: 32, 32>}, {pipeline_mode = #tpu.pipeline_mode<synchronous>, transform_indices = @transform_8, window_bounds = array<i64: 1, 32>}, {pipeline_mode = #tpu.pipeline_mode<synchronous>, transform_indices = @transform_9, window_bounds = array<i64: 1, 32>}, {pipeline_mode = #tpu.pipeline_mode<synchronous>, transform_indices = @transform_10, window_bounds = array<i64: 1, 32>}, {pipeline_mode = #tpu.pipeline_mode<synchronous>, transform_indices = @transform_11, window_bounds = array<i64: 32, 64>}, {pipeline_mode = #tpu.pipeline_mode<synchronous>, transform_indices = @transform_12, window_bounds = array<i64: 1, 64>}, {pipeline_mode = #tpu.pipeline_mode<synchronous>, transform_indices = @transform_13, window_bounds = array<i64: 64, 32>}, {pipeline_mode = #tpu.pipeline_mode<synchronous>, transform_indices = @transform_14, window_bounds = array<i64: 1, 32>}, {transform_indices = @transform_15, window_bounds = array<i64: 8, 32>}]} {
    %c0 = arith.constant 0 : index
    %c0_0 = arith.constant 0 : index
    %c0_1 = arith.constant 0 : index
    %0 = vector.load %arg2[%c0, %c0_0, %c0_1] : memref<8x8x32xbf16, #tpu.memory_space<vmem>>, vector<8x8x32xbf16>
    %1 = vector.shape_cast %0 : vector<8x8x32xbf16> to vector<64x32xbf16>
    %c0_2 = arith.constant 0 : index
    %c0_3 = arith.constant 0 : index
    %2 = vector.load %arg4[%c0_2, %c0_3] : memref<32x4xbf16, #tpu.memory_space<vmem>>, vector<32x4xbf16>
    %cst = arith.constant dense<0.000000e+00> : vector<64x4xf32>
    %3 = tpu.matmul %1, %2, %cst {dimension_numbers = #tpu.dot_dimension_numbers<[1], [0], [0], [1], [0, 0, 1, 1], [], []>} : vector<64x32xbf16>, vector<32x4xbf16>, vector<64x4xf32> -> vector<64x4xf32>
    %c0_4 = arith.constant 0 : index
    %c0_5 = arith.constant 0 : index
    %4 = vector.load %arg5[%c0_4, %c0_5] : memref<1x4xf32, #tpu.memory_space<vmem>>, vector<1x4xf32>
    %5 = vector.broadcast %4 : vector<1x4xf32> to vector<64x4xf32>
    %6 = arith.addf %3, %5 : vector<64x4xf32>
    %c0_6 = arith.constant 0 : index
    %c0_7 = arith.constant 0 : index
    %7 = vector.load %arg6[%c0_6, %c0_7] : memref<32x32xbf16, #tpu.memory_space<vmem>>, vector<32x32xbf16>
    %cst_8 = arith.constant dense<0.000000e+00> : vector<64x32xf32>
    %8 = tpu.matmul %1, %7, %cst_8 {dimension_numbers = #tpu.dot_dimension_numbers<[1], [0], [0], [1], [0, 0, 1, 1], [], []>} : vector<64x32xbf16>, vector<32x32xbf16>, vector<64x32xf32> -> vector<64x32xf32>
    %c0_9 = arith.constant 0 : index
    %c0_10 = arith.constant 0 : index
    %9 = vector.load %arg7[%c0_9, %c0_10] : memref<1x32xf32, #tpu.memory_space<vmem>>, vector<1x32xf32>
    %10 = vector.broadcast %9 : vector<1x32xf32> to vector<64x32xf32>
    %11 = arith.addf %8, %10 : vector<64x32xf32>
    %12 = vector.shape_cast %6 : vector<64x4xf32> to vector<8x8x4xf32>
    %c0_11 = arith.constant 0 : index
    %c0_12 = arith.constant 0 : index
    %13 = vector.load %arg1[%c0_11, %c0_12] : memref<8x8xf32, #tpu.memory_space<vmem>>, vector<8x8xf32>
    %14 = vector.shape_cast %13 : vector<8x8xf32> to vector<8x8x1xf32>
    %cst_13 = arith.constant 5.000000e-01 : f32
    %15 = vector.broadcast %cst_13 : f32 to vector<8x8x1xf32>
    %16 = arith.cmpf ogt, %14, %15 : vector<8x8x1xf32>
    %cst_14 = arith.constant -9.99999984E+17 : f32
    %17 = vector.shape_cast %16 : vector<8x8x1xi1> to vector<8x8x1xi1>
    %18 = vector.broadcast %17 : vector<8x8x1xi1> to vector<8x8x4xi1>
    %19 = vector.broadcast %cst_14 : f32 to vector<8x8x4xf32>
    %20 = arith.select %18, %19, %12 : vector<8x8x4xi1>, vector<8x8x4xf32>
    %cst_15 = arith.constant dense<0xFF800000> : vector<8x4xf32>
    %21 = vector.multi_reduction <maximumf>, %20, %cst_15 [1] : vector<8x8x4xf32> to vector<8x4xf32>
    %22 = vector.shape_cast %21 : vector<8x4xf32> to vector<8x1x4xf32>
    %23 = vector.broadcast %22 : vector<8x1x4xf32> to vector<8x8x4xf32>
    %24 = arith.subf %20, %23 : vector<8x8x4xf32>
    %25 = math.exp %24 : vector<8x8x4xf32>
    %cst_16 = arith.constant dense<0.000000e+00> : vector<8x4xf32>
    %26 = vector.multi_reduction <add>, %25, %cst_16 [1] : vector<8x8x4xf32> to vector<8x4xf32>
    %27 = vector.shape_cast %26 : vector<8x4xf32> to vector<8x1x4xf32>
    %28 = tpu.reciprocal %27 {approx = true} : vector<8x1x4xf32> -> vector<8x1x4xf32>
    %29 = vector.broadcast %28 : vector<8x1x4xf32> to vector<8x8x4xf32>
    %30 = arith.mulf %25, %29 : vector<8x8x4xf32>
    %31 = vector.shape_cast %30 : vector<8x8x4xf32> to vector<64x4xf32>
    %c0_17 = arith.constant 0 : index
    %c0_18 = arith.constant 0 : index
    %32 = vector.load %arg3[%c0_17, %c0_18] : memref<4x32xf32, #tpu.memory_space<vmem>>, vector<4x32xf32>
    %cst_19 = arith.constant dense<0.000000e+00> : vector<64x32xf32>
    %33 = tpu.matmul %31, %32, %cst_19 {dimension_numbers = #tpu.dot_dimension_numbers<[1], [0], [0], [1], [0, 0, 1, 1], [], []>} : vector<64x4xf32>, vector<4x32xf32>, vector<64x32xf32> -> vector<64x32xf32>
    %34 = arith.mulf %33, %11 : vector<64x32xf32>
    %35 = vector.shape_cast %34 : vector<64x32xf32> to vector<8x8x32xf32>
    %cst_20 = arith.constant dense<0.000000e+00> : vector<8x32xf32>
    %36 = vector.multi_reduction <add>, %35, %cst_20 [1] : vector<8x8x32xf32> to vector<8x32xf32>
    %37 = arith.truncf %36 : vector<8x32xf32> to vector<8x32xbf16>
    %c0_21 = arith.constant 0 : index
    %c0_22 = arith.constant 0 : index
    %38 = vector.load %arg8[%c0_21, %c0_22] : memref<32x32xbf16, #tpu.memory_space<vmem>>, vector<32x32xbf16>
    %cst_23 = arith.constant dense<0.000000e+00> : vector<8x32xf32>
    %39 = tpu.matmul %37, %38, %cst_23 {dimension_numbers = #tpu.dot_dimension_numbers<[1], [0], [0], [1], [0, 0, 1, 1], [], []>} : vector<8x32xbf16>, vector<32x32xbf16>, vector<8x32xf32> -> vector<8x32xf32>
    %c0_24 = arith.constant 0 : index
    %c0_25 = arith.constant 0 : index
    %40 = vector.load %arg9[%c0_24, %c0_25] : memref<1x32xf32, #tpu.memory_space<vmem>>, vector<1x32xf32>
    %41 = vector.broadcast %40 : vector<1x32xf32> to vector<8x32xf32>
    %42 = arith.addf %39, %41 : vector<8x32xf32>
    %cst_26 = arith.constant dense<0.000000e+00> : vector<8xf32>
    %43 = vector.multi_reduction <add>, %42, %cst_26 [1] : vector<8x32xf32> to vector<8xf32>
    %44 = vector.shape_cast %43 : vector<8xf32> to vector<8x1xf32>
    %cst_27 = arith.constant 3.200000e+01 : f32
    %45 = vector.broadcast %cst_27 : f32 to vector<8x1xf32>
    %46 = arith.divf %44, %45 : vector<8x1xf32>
    %47 = vector.broadcast %46 : vector<8x1xf32> to vector<8x32xf32>
    %48 = arith.subf %42, %47 : vector<8x32xf32>
    %49 = arith.mulf %48, %48 : vector<8x32xf32>
    %cst_28 = arith.constant dense<0.000000e+00> : vector<8xf32>
    %50 = vector.multi_reduction <add>, %49, %cst_28 [1] : vector<8x32xf32> to vector<8xf32>
    %51 = vector.shape_cast %50 : vector<8xf32> to vector<8x1xf32>
    %cst_29 = arith.constant 3.200000e+01 : f32
    %52 = vector.broadcast %cst_29 : f32 to vector<8x1xf32>
    %53 = arith.divf %51, %52 : vector<8x1xf32>
    %54 = vector.broadcast %46 : vector<8x1xf32> to vector<8x32xf32>
    %55 = arith.subf %42, %54 : vector<8x32xf32>
    %cst_30 = arith.constant 9.99999997E-7 : f32
    %56 = vector.broadcast %cst_30 : f32 to vector<8x1xf32>
    %57 = arith.addf %53, %56 : vector<8x1xf32>
    %58 = math.rsqrt %57 : vector<8x1xf32>
    %59 = vector.broadcast %58 : vector<8x1xf32> to vector<8x32xf32>
    %60 = arith.mulf %55, %59 : vector<8x32xf32>
    %c0_31 = arith.constant 0 : index
    %c0_32 = arith.constant 0 : index
    %61 = vector.load %arg10[%c0_31, %c0_32] : memref<1x32xf32, #tpu.memory_space<vmem>>, vector<1x32xf32>
    %62 = vector.broadcast %61 : vector<1x32xf32> to vector<8x32xf32>
    %63 = arith.mulf %60, %62 : vector<8x32xf32>
    %c0_33 = arith.constant 0 : index
    %c0_34 = arith.constant 0 : index
    %64 = vector.load %arg11[%c0_33, %c0_34] : memref<1x32xf32, #tpu.memory_space<vmem>>, vector<1x32xf32>
    %65 = vector.broadcast %64 : vector<1x32xf32> to vector<8x32xf32>
    %66 = arith.addf %63, %65 : vector<8x32xf32>
    %67 = arith.truncf %66 : vector<8x32xf32> to vector<8x32xbf16>
    %c0_35 = arith.constant 0 : index
    %c0_36 = arith.constant 0 : index
    %68 = vector.load %arg12[%c0_35, %c0_36] : memref<32x64xbf16, #tpu.memory_space<vmem>>, vector<32x64xbf16>
    %cst_37 = arith.constant dense<0.000000e+00> : vector<8x64xf32>
    %69 = tpu.matmul %67, %68, %cst_37 {dimension_numbers = #tpu.dot_dimension_numbers<[1], [0], [0], [1], [0, 0, 1, 1], [], []>} : vector<8x32xbf16>, vector<32x64xbf16>, vector<8x64xf32> -> vector<8x64xf32>
    %c0_38 = arith.constant 0 : index
    %c0_39 = arith.constant 0 : index
    %70 = vector.load %arg13[%c0_38, %c0_39] : memref<1x64xf32, #tpu.memory_space<vmem>>, vector<1x64xf32>
    %71 = vector.broadcast %70 : vector<1x64xf32> to vector<8x64xf32>
    %72 = arith.addf %69, %71 : vector<8x64xf32>
    %cst_40 = arith.constant 5.000000e-01 : f32
    %73 = vector.broadcast %cst_40 : f32 to vector<8x64xf32>
    %74 = arith.mulf %73, %72 : vector<8x64xf32>
    %cst_41 = arith.constant 4.471500e-02 : f32
    %75 = vector.broadcast %cst_41 : f32 to vector<8x64xf32>
    %76 = arith.mulf %75, %72 : vector<8x64xf32>
    %77 = arith.mulf %76, %72 : vector<8x64xf32>
    %78 = arith.mulf %77, %72 : vector<8x64xf32>
    %79 = arith.addf %72, %78 : vector<8x64xf32>
    %cst_42 = arith.constant 0.797884583 : f32
    %80 = vector.broadcast %cst_42 : f32 to vector<8x64xf32>
    %81 = arith.mulf %80, %79 : vector<8x64xf32>
    %82 = math.tanh %81 : vector<8x64xf32>
    %cst_43 = arith.constant 1.000000e+00 : f32
    %83 = vector.broadcast %cst_43 : f32 to vector<8x64xf32>
    %84 = arith.addf %83, %82 : vector<8x64xf32>
    %85 = arith.mulf %74, %84 : vector<8x64xf32>
    %86 = arith.truncf %85 : vector<8x64xf32> to vector<8x64xbf16>
    %c0_44 = arith.constant 0 : index
    %c0_45 = arith.constant 0 : index
    %87 = vector.load %arg14[%c0_44, %c0_45] : memref<64x32xbf16, #tpu.memory_space<vmem>>, vector<64x32xbf16>
    %cst_46 = arith.constant dense<0.000000e+00> : vector<8x32xf32>
    %88 = tpu.matmul %86, %87, %cst_46 {dimension_numbers = #tpu.dot_dimension_numbers<[1], [0], [0], [1], [0, 0, 1, 1], [], []>} : vector<8x64xbf16>, vector<64x32xbf16>, vector<8x32xf32> -> vector<8x32xf32>
    %c0_47 = arith.constant 0 : index
    %c0_48 = arith.constant 0 : index
    %89 = vector.load %arg15[%c0_47, %c0_48] : memref<1x32xf32, #tpu.memory_space<vmem>>, vector<1x32xf32>
    %90 = vector.broadcast %89 : vector<1x32xf32> to vector<8x32xf32>
    %91 = arith.addf %88, %90 : vector<8x32xf32>
    %92 = arith.addf %91, %42 : vector<8x32xf32>
    %c0_49 = arith.constant 0 : index
    %c0_50 = arith.constant 0 : index
    %93 = vector.load %arg16[%c0_49, %c0_50] : memref<8x32xf32, #tpu.memory_space<vmem>>, vector<8x32xf32>
    tpu.vector_store %arg16[%c0_49, %c0_50], %92 {strides = array<i32>} : memref<8x32xf32, #tpu.memory_space<vmem>>, vector<8x32xf32>,
    return
  }
  func.func @transform_0(%arg0: i32) -> (i32, i32) {
    %c0_i32 = arith.constant 0 : i32
    %c0_i32_0 = arith.constant 0 : i32
    return %arg0, %c0_i32 : i32, i32
  }
  func.func @transform_1(%arg0: i32) -> (i32, i32, i32) {
    %c0_i32 = arith.constant 0 : i32
    %c0_i32_0 = arith.constant 0 : i32
    %c0_i32_1 = arith.constant 0 : i32
    return %arg0, %c0_i32, %c0_i32_0 : i32, i32, i32
  }
  func.func @transform_2(%arg0: i32) -> (i32, i32) {
    %c0_i32 = arith.constant 0 : i32
    %c0_i32_0 = arith.constant 0 : i32
    %c0_i32_1 = arith.constant 0 : i32
    return %c0_i32, %c0_i32_0 : i32, i32
  }
  func.func @transform_3(%arg0: i32) -> (i32, i32) {
    %c0_i32 = arith.constant 0 : i32
    %c0_i32_0 = arith.constant 0 : i32
    %c0_i32_1 = arith.constant 0 : i32
    return %c0_i32, %c0_i32_0 : i32, i32
  }
  func.func @transform_4(%arg0: i32) -> (i32, i32) {
    %c0_i32 = arith.constant 0 : i32
    %c0_i32_0 = arith.constant 0 : i32
    %c0_i32_1 = arith.constant 0 : i32
    return %c0_i32, %c0_i32_0 : i32, i32
  }
  func.func @transform_5(%arg0: i32) -> (i32, i32) {
    %c0_i32 = arith.constant 0 : i32
    %c0_i32_0 = arith.constant 0 : i32
    %c0_i32_1 = arith.constant 0 : i32
    return %c0_i32, %c0_i32_0 : i32, i32
  }
  func.func @transform_6(%arg0: i32) -> (i32, i32) {
    %c0_i32 = arith.constant 0 : i32
    %c0_i32_0 = arith.constant 0 : i32
    %c0_i32_1 = arith.constant 0 : i32
    return %c0_i32, %c0_i32_0 : i32, i32
  }
  func.func @transform_7(%arg0: i32) -> (i32, i32) {
    %c0_i32 = arith.constant 0 : i32
    %c0_i32_0 = arith.constant 0 : i32
    %c0_i32_1 = arith.constant 0 : i32
    return %c0_i32, %c0_i32_0 : i32, i32
  }
  func.func @transform_8(%arg0: i32) -> (i32, i32) {
    %c0_i32 = arith.constant 0 : i32
    %c0_i32_0 = arith.constant 0 : i32
    %c0_i32_1 = arith.constant 0 : i32
    return %c0_i32, %c0_i32_0 : i32, i32
  }
  func.func @transform_9(%arg0: i32) -> (i32, i32) {
    %c0_i32 = arith.constant 0 : i32
    %c0_i32_0 = arith.constant 0 : i32
    %c0_i32_1 = arith.constant 0 : i32
    return %c0_i32, %c0_i32_0 : i32, i32
  }
  func.func @transform_10(%arg0: i32) -> (i32, i32) {
    %c0_i32 = arith.constant 0 : i32
    %c0_i32_0 = arith.constant 0 : i32
    %c0_i32_1 = arith.constant 0 : i32
    return %c0_i32, %c0_i32_0 : i32, i32
  }
  func.func @transform_11(%arg0: i32) -> (i32, i32) {
    %c0_i32 = arith.constant 0 : i32
    %c0_i32_0 = arith.constant 0 : i32
    %c0_i32_1 = arith.constant 0 : i32
    return %c0_i32, %c0_i32_0 : i32, i32
  }
  func.func @transform_12(%arg0: i32) -> (i32, i32) {
    %c0_i32 = arith.constant 0 : i32
    %c0_i32_0 = arith.constant 0 : i32
    %c0_i32_1 = arith.constant 0 : i32
    return %c0_i32, %c0_i32_0 : i32, i32
  }
  func.func @transform_13(%arg0: i32) -> (i32, i32) {
    %c0_i32 = arith.constant 0 : i32
    %c0_i32_0 = arith.constant 0 : i32
    %c0_i32_1 = arith.constant 0 : i32
    return %c0_i32, %c0_i32_0 : i32, i32
  }
  func.func @transform_14(%arg0: i32) -> (i32, i32) {
    %c0_i32 = arith.constant 0 : i32
    %c0_i32_0 = arith.constant 0 : i32
    %c0_i32_1 = arith.constant 0 : i32
    return %c0_i32, %c0_i32_0 : i32, i32
  }
  func.func @transform_15(%arg0: i32) -> (i32, i32) {
    %c0_i32 = arith.constant 0 : i32
    %c0_i32_0 = arith.constant 0 : i32
    return %arg0, %c0_i32 : i32, i32
  }
}

</mosaic_0001>

<llo_original>
// kernel: tpu_custom_call.1
$region0: #{tpu_custom_call.1}
  #allocation0 [shape = 'u32[]', space=smem, size = 0x4, offset = 0x4, fixed_abs, tag = 'smem constant byte address 0x4 - core index']
  #allocation1 [shape = 'u32[72,128]{1,0:T(1,128)}', space=vmem, size = 0x9000, scoped, tag = 'internal scratch']
  %s0 = inlined_call_operand.vmem [shape: f32[16,8], index: 0, kind: input, shape index: {}]
  %s1 = inlined_call_operand.vmem [shape: bf16[16,8,32], index: 1, kind: input, shape index: {}]
  %s2 = inlined_call_operand.vmem [shape: f32[4,32], index: 2, kind: input, shape index: {}]
  %s3 = inlined_call_operand.vmem [shape: bf16[32,4], index: 3, kind: input, shape index: {}]
  %s4 = inlined_call_operand.vmem [shape: f32[1,4], index: 4, kind: input, shape index: {}]
  %s5 = inlined_call_operand.hbm [shape: bf16[32,32], index: 5, kind: input, shape index: {}]
  %s6 = inlined_call_operand.vmem [shape: f32[1,32], index: 6, kind: input, shape index: {}]
  %s7 = inlined_call_operand.hbm [shape: bf16[32,32], index: 7, kind: input, shape index: {}]
  %s8 = inlined_call_operand.vmem [shape: f32[1,32], index: 8, kind: input, shape index: {}]
  %s9 = inlined_call_operand.vmem [shape: f32[1,32], index: 9, kind: input, shape index: {}]
  %s10 = inlined_call_operand.vmem [shape: f32[1,32], index: 10, kind: input, shape index: {}]
  %s11 = inlined_call_operand.hbm [shape: bf16[32,64], index: 11, kind: input, shape index: {}]
  %s12 = inlined_call_operand.vmem [shape: f32[1,64], index: 12, kind: input, shape index: {}]
  %s13 = inlined_call_operand.vmem [shape: bf16[64,32], index: 13, kind: input, shape index: {}]
  %s14 = inlined_call_operand.vmem [shape: f32[1,32], index: 14, kind: input, shape index: {}]
  %s15 = inlined_call_operand.hbm [shape: f32[16,32], index: 15, kind: output, shape index: {}]
  %s16 = sld [smem:[#allocation0]]
  $region105: #{tpu_custom_call.1} parent=0
    _
  %s18 = ssub.s32 1, %s16
  %s19 = scalar_select 0, %s18, %s16
  $region1: #{tpu_custom_call.1} parent=0
    #allocation2 [shape = 'u8[8192]{0}', space=vmem, size = 0x2000, scoped, tag = 'input window, operand 5, single buffered']
    #allocation3 [shape = 's32[2]{0}', space=sflag, size = 0x8, scoped, tag = 'scoped memory for tpu_custom_call.1']
    #allocation4 [shape = 's32[2]{0}', space=sflag, size = 0x8, scoped, tag = 'scoped memory for tpu_custom_call.1']
    #allocation5 [shape = 'u8[8192]{0}', space=vmem, size = 0x2000, scoped, tag = 'input window, operand 7, single buffered']
    #allocation6 [shape = 's32[1]{0}', space=sflag, size = 0x4, scoped, tag = 'scoped memory for tpu_custom_call.1']
    #allocation7 [shape = 'u8[8192]{0}', space=vmem, size = 0x2000, scoped, tag = 'input window, operand 11, single buffered']
    #allocation8 [shape = 'u8[8192]{0}', space=vmem, size = 0x2000, scoped, tag = 'output window, operand 0']
    %20 = vsyncpa [#allocation3], 0
    %21 = vsyncpa [#allocation6], 0
    %22 = vsyncpa [#allocation4], 0
    %s23 = scalar_lea.sflag [#allocation4], 1
    %24 = vsyncpa %s23, 0
    loop: start=0, step=1, limit=4
    $region2: #{tpu_custom_call.1} parent=1 // loop_pre_header
      _
    $region3: #{tpu_custom_call.1} parent=1 // loop_header
      %s26 = sphi 0, %s30
      %p27 = scmp.ge.s32.totalorder %s26, 4
      %s36 = sphi 0, %s38
      %s39 = sphi 0, %s36
      %s40 = sphi 0, %s39
      %s56 = sphi 0, %s40
      %s62 = sphi 0, %s64
      %s65 = sphi 0, %s62
      %s66 = sphi 0, %s65
      %s82 = sphi 0, %s66
      %s86 = sphi 0, %s86
      %s88 = sphi 0, %s86
      %s89 = sphi 0, %s88
      %s103 = sphi 0, %s89
      %s107 = sphi 0, %s107
      %s109 = sphi 0, %s107
      %s110 = sphi 0, %s109
      %s124 = sphi 0, %s110
      %s128 = sphi 0, %s128
      %s130 = sphi 0, %s128
      %s131 = sphi 0, %s130
      %s145 = sphi 0, %s131
      %s149 = sphi 0, %s149
      %s151 = sphi 0, %s149
      %s152 = sphi 0, %s151
      %s166 = sphi 0, %s152
      %s170 = sphi 0, %s170
      %s172 = sphi 0, %s170
      %s173 = sphi 0, %s172
      %s187 = sphi 0, %s173
      %s191 = sphi 0, %s191
      %s193 = sphi 0, %s191
      %s194 = sphi 0, %s193
      %s208 = sphi 0, %s194
      %s212 = sphi 0, %s212
      %s214 = sphi 0, %s212
      %s215 = sphi 0, %s214
      %s229 = sphi 0, %s215
      %s233 = sphi 0, %s233
      %s235 = sphi 0, %s233
      %s236 = sphi 0, %s235
      %s250 = sphi 0, %s236
      %s254 = sphi 0, %s254
      %s256 = sphi 0, %s254
      %s257 = sphi 0, %s256
      %s271 = sphi 0, %s257
      %s275 = sphi 0, %s275
      %s277 = sphi 0, %s275
      %s278 = sphi 0, %s277
      %s292 = sphi 0, %s278
      %s296 = sphi 0, %s296
      %s298 = sphi 0, %s296
      %s299 = sphi 0, %s298
      %s313 = sphi 0, %s299
      %s317 = sphi 0, %s317
      %s319 = sphi 0, %s317
      %s320 = sphi 0, %s319
      %s334 = sphi 0, %s320
      %s338 = sphi 0, %s338
      %s340 = sphi 0, %s338
      %s341 = sphi 0, %s340
      %s355 = sphi 0, %s341
      %s361 = sphi 0, %s363
      %s364 = sphi 0, %s361
      %s365 = sphi 0, %s364
      %s381 = sphi 0, %s365
    $region4: #{tpu_custom_call.1} parent=1 // loop_header_branch
      %29 = sbr.rel (%p27) target = $region8
    $region5: #{tpu_custom_call.1} parent=1 // loop_body
      %s31 = ssub.s32 %s26, 1
      %s32 = ssub.s32 %s26, 2
      %s33 = sadd.s32 %s26, 1
      %s34 = ssub.s32 %s26, %s33
      %p35 = scmp.eq.s32.totalorder %s34, 0
      %s37 = sadd.s32 %s36, 1
      %s38 = scalar_select %p35, %s36, %s37
      %p41 = pneg %p35
      %p42 = scmp.eq.s32.totalorder %s26, 1
      %p43 = por %p41, %p42
      %p44 = scmp.ne.s32.totalorder %s36, %s39
      %p45 = scmp.eq.s32.totalorder %s26, 0
      %p46 = por %p44, %p45
      %p47 = scmp.ne.s32.totalorder %s36, %s39
      %p48 = scmp.eq.s32.totalorder %s31, 1
      %p49 = por %p47, %p48
      %p50 = scmp.ne.s32.totalorder %s39, %s40
      %p51 = scmp.eq.s32.totalorder %s31, 0
      %p52 = por %p50, %p51
      %p53 = scmp.ne.s32.totalorder %s39, %s40
      %p54 = scmp.eq.s32.totalorder %s32, 1
      %p55 = por %p53, %p54
      %p57 = scmp.ne.s32.totalorder %s40, %s56
      %p58 = scmp.eq.s32.totalorder %s32, 0
      %p59 = por %p57, %p58
      %s60 = ssub.s32 %s26, %s33
      %p61 = scmp.eq.s32.totalorder %s60, 0
      %s63 = sadd.s32 %s62, 1
      %s64 = scalar_select %p61, %s62, %s63
      %p67 = pneg %p61
      %p68 = scmp.eq.s32.totalorder %s26, 1
      %p69 = por %p67, %p68
      %p70 = scmp.ne.s32.totalorder %s62, %s65
      %p71 = scmp.eq.s32.totalorder %s26, 0
      %p72 = por %p70, %p71
      %p73 = scmp.ne.s32.totalorder %s62, %s65
      %p74 = scmp.eq.s32.totalorder %s31, 1
      %p75 = por %p73, %p74
      %p76 = scmp.ne.s32.totalorder %s65, %s66
      %p77 = scmp.eq.s32.totalorder %s31, 0
      %p78 = por %p76, %p77
      %p79 = scmp.ne.s32.totalorder %s65, %s66
      %p80 = scmp.eq.s32.totalorder %s32, 1
      %p81 = por %p79, %p80
      %p83 = scmp.ne.s32.totalorder %s66, %s82
      %p84 = scmp.eq.s32.totalorder %s32, 0
      %p85 = por %p83, %p84
      %s87 = sadd.s32 %s86, 1
      %p90 = scmp.eq.s32.totalorder %s26, 1
      %p91 = scmp.ne.s32.totalorder %s86, %s88
      %p92 = scmp.eq.s32.totalorder %s26, 0
      %p93 = por %p91, %p92
      %p94 = scmp.ne.s32.totalorder %s86, %s88
      %p95 = scmp.eq.s32.totalorder %s31, 1
      %p96 = por %p94, %p95
      %p97 = scmp.ne.s32.totalorder %s88, %s89
      %p98 = scmp.eq.s32.totalorder %s31, 0
      %p99 = por %p97, %p98
      %p100 = scmp.ne.s32.totalorder %s88, %s89
      %p101 = scmp.eq.s32.totalorder %s32, 1
      %p102 = por %p100, %p101
      %p104 = scmp.ne.s32.totalorder %s89, %s103
      %p105 = scmp.eq.s32.totalorder %s32, 0
      %p106 = por %p104, %p105
      %s108 = sadd.s32 %s107, 1
      %p111 = scmp.eq.s32.totalorder %s26, 1
      %p112 = scmp.ne.s32.totalorder %s107, %s109
      %p113 = scmp.eq.s32.totalorder %s26, 0
      %p114 = por %p112, %p113
      %p115 = scmp.ne.s32.totalorder %s107, %s109
      %p116 = scmp.eq.s32.totalorder %s31, 1
      %p117 = por %p115, %p116
      %p118 = scmp.ne.s32.totalorder %s109, %s110
      %p119 = scmp.eq.s32.totalorder %s31, 0
      %p120 = por %p118, %p119
      %p121 = scmp.ne.s32.totalorder %s109, %s110
      %p122 = scmp.eq.s32.totalorder %s32, 1
      %p123 = por %p121, %p122
      %p125 = scmp.ne.s32.totalorder %s110, %s124
      %p126 = scmp.eq.s32.totalorder %s32, 0
      %p127 = por %p125, %p126
      %s129 = sadd.s32 %s128, 1
      %p132 = scmp.eq.s32.totalorder %s26, 1
      %p133 = scmp.ne.s32.totalorder %s128, %s130
      %p134 = scmp.eq.s32.totalorder %s26, 0
      %p135 = por %p133, %p134
      %p136 = scmp.ne.s32.totalorder %s128, %s130
      %p137 = scmp.eq.s32.totalorder %s31, 1
      %p138 = por %p136, %p137
      %p139 = scmp.ne.s32.totalorder %s130, %s131
      %p140 = scmp.eq.s32.totalorder %s31, 0
      %p141 = por %p139, %p140
      %p142 = scmp.ne.s32.totalorder %s130, %s131
      %p143 = scmp.eq.s32.totalorder %s32, 1
      %p144 = por %p142, %p143
      %p146 = scmp.ne.s32.totalorder %s131, %s145
      %p147 = scmp.eq.s32.totalorder %s32, 0
      %p148 = por %p146, %p147
      %s150 = sadd.s32 %s149, 1
      %p153 = scmp.eq.s32.totalorder %s26, 1
      %p154 = scmp.ne.s32.totalorder %s149, %s151
      %p155 = scmp.eq.s32.totalorder %s26, 0
      %p156 = por %p154, %p155
      %p157 = scmp.ne.s32.totalorder %s149, %s151
      %p158 = scmp.eq.s32.totalorder %s31, 1
      %p159 = por %p157, %p158
      %p160 = scmp.ne.s32.totalorder %s151, %s152
      %p161 = scmp.eq.s32.totalorder %s31, 0
      %p162 = por %p160, %p161
      %p163 = scmp.ne.s32.totalorder %s151, %s152
      %p164 = scmp.eq.s32.totalorder %s32, 1
      %p165 = por %p163, %p164
      %p167 = scmp.ne.s32.totalorder %s152, %s166
      %p168 = scmp.eq.s32.totalorder %s32, 0
      %p169 = por %p167, %p168
      %s171 = sadd.s32 %s170, 1
      %p174 = scmp.eq.s32.totalorder %s26, 1
      %p175 = scmp.ne.s32.totalorder %s170, %s172
      %p176 = scmp.eq.s32.totalorder %s26, 0
      %p177 = por %p175, %p176
      %p178 = scmp.ne.s32.totalorder %s170, %s172
      %p179 = scmp.eq.s32.totalorder %s31, 1
      %p180 = por %p178, %p179
      %p181 = scmp.ne.s32.totalorder %s172, %s173
      %p182 = scmp.eq.s32.totalorder %s31, 0
      %p183 = por %p181, %p182
      %p184 = scmp.ne.s32.totalorder %s172, %s173
      %p185 = scmp.eq.s32.totalorder %s32, 1
      %p186 = por %p184, %p185
      %p188 = scmp.ne.s32.totalorder %s173, %s187
      %p189 = scmp.eq.s32.totalorder %s32, 0
      %p190 = por %p188, %p189
      %s192 = sadd.s32 %s191, 1
      %p195 = scmp.eq.s32.totalorder %s26, 1
      %p196 = scmp.ne.s32.totalorder %s191, %s193
      %p197 = scmp.eq.s32.totalorder %s26, 0
      %p198 = por %p196, %p197
      %p199 = scmp.ne.s32.totalorder %s191, %s193
      %p200 = scmp.eq.s32.totalorder %s31, 1
      %p201 = por %p199, %p200
      %p202 = scmp.ne.s32.totalorder %s193, %s194
      %p203 = scmp.eq.s32.totalorder %s31, 0
      %p204 = por %p202, %p203
      %p205 = scmp.ne.s32.totalorder %s193, %s194
      %p206 = scmp.eq.s32.totalorder %s32, 1
      %p207 = por %p205, %p206
      %p209 = scmp.ne.s32.totalorder %s194, %s208
      %p210 = scmp.eq.s32.totalorder %s32, 0
      %p211 = por %p209, %p210
      %s213 = sadd.s32 %s212, 1
      %p216 = scmp.eq.s32.totalorder %s26, 1
      %p217 = scmp.ne.s32.totalorder %s212, %s214
      %p218 = scmp.eq.s32.totalorder %s26, 0
      %p219 = por %p217, %p218
      %p220 = scmp.ne.s32.totalorder %s212, %s214
      %p221 = scmp.eq.s32.totalorder %s31, 1
      %p222 = por %p220, %p221
      %p223 = scmp.ne.s32.totalorder %s214, %s215
      %p224 = scmp.eq.s32.totalorder %s31, 0
      %p225 = por %p223, %p224
      %p226 = scmp.ne.s32.totalorder %s214, %s215
      %p227 = scmp.eq.s32.totalorder %s32, 1
      %p228 = por %p226, %p227
      %p230 = scmp.ne.s32.totalorder %s215, %s229
      %p231 = scmp.eq.s32.totalorder %s32, 0
      %p232 = por %p230, %p231
      %s234 = sadd.s32 %s233, 1
      %p237 = scmp.eq.s32.totalorder %s26, 1
      %p238 = scmp.ne.s32.totalorder %s233, %s235
      %p239 = scmp.eq.s32.totalorder %s26, 0
      %p240 = por %p238, %p239
      %p241 = scmp.ne.s32.totalorder %s233, %s235
      %p242 = scmp.eq.s32.totalorder %s31, 1
      %p243 = por %p241, %p242
      %p244 = scmp.ne.s32.totalorder %s235, %s236
      %p245 = scmp.eq.s32.totalorder %s31, 0
      %p246 = por %p244, %p245
      %p247 = scmp.ne.s32.totalorder %s235, %s236
      %p248 = scmp.eq.s32.totalorder %s32, 1
      %p249 = por %p247, %p248
      %p251 = scmp.ne.s32.totalorder %s236, %s250
      %p252 = scmp.eq.s32.totalorder %s32, 0
      %p253 = por %p251, %p252
      %s255 = sadd.s32 %s254, 1
      %p258 = scmp.eq.s32.totalorder %s26, 1
      %p259 = scmp.ne.s32.totalorder %s254, %s256
      %p260 = scmp.eq.s32.totalorder %s26, 0
      %p261 = por %p259, %p260
      %p262 = scmp.ne.s32.totalorder %s254, %s256
      %p263 = scmp.eq.s32.totalorder %s31, 1
      %p264 = por %p262, %p263
      %p265 = scmp.ne.s32.totalorder %s256, %s257
      %p266 = scmp.eq.s32.totalorder %s31, 0
      %p267 = por %p265, %p266
      %p268 = scmp.ne.s32.totalorder %s256, %s257
      %p269 = scmp.eq.s32.totalorder %s32, 1
      %p270 = por %p268, %p269
      %p272 = scmp.ne.s32.totalorder %s257, %s271
      %p273 = scmp.eq.s32.totalorder %s32, 0
      %p274 = por %p272, %p273
      %s276 = sadd.s32 %s275, 1
      %p279 = scmp.eq.s32.totalorder %s26, 1
      %p280 = scmp.ne.s32.totalorder %s275, %s277
      %p281 = scmp.eq.s32.totalorder %s26, 0
      %p282 = por %p280, %p281
      %p283 = scmp.ne.s32.totalorder %s275, %s277
      %p284 = scmp.eq.s32.totalorder %s31, 1
      %p285 = por %p283, %p284
      %p286 = scmp.ne.s32.totalorder %s277, %s278
      %p287 = scmp.eq.s32.totalorder %s31, 0
      %p288 = por %p286, %p287
      %p289 = scmp.ne.s32.totalorder %s277, %s278
      %p290 = scmp.eq.s32.totalorder %s32, 1
      %p291 = por %p289, %p290
      %p293 = scmp.ne.s32.totalorder %s278, %s292
      %p294 = scmp.eq.s32.totalorder %s32, 0
      %p295 = por %p293, %p294
      %s297 = sadd.s32 %s296, 1
      %p300 = scmp.eq.s32.totalorder %s26, 1
      %p301 = scmp.ne.s32.totalorder %s296, %s298
      %p302 = scmp.eq.s32.totalorder %s26, 0
      %p303 = por %p301, %p302
      %p304 = scmp.ne.s32.totalorder %s296, %s298
      %p305 = scmp.eq.s32.totalorder %s31, 1
      %p306 = por %p304, %p305
      %p307 = scmp.ne.s32.totalorder %s298, %s299
      %p308 = scmp.eq.s32.totalorder %s31, 0
      %p309 = por %p307, %p308
      %p310 = scmp.ne.s32.totalorder %s298, %s299
      %p311 = scmp.eq.s32.totalorder %s32, 1
      %p312 = por %p310, %p311
      %p314 = scmp.ne.s32.totalorder %s299, %s313
      %p315 = scmp.eq.s32.totalorder %s32, 0
      %p316 = por %p314, %p315
      %s318 = sadd.s32 %s317, 1
      %p321 = scmp.eq.s32.totalorder %s26, 1
      %p322 = scmp.ne.s32.totalorder %s317, %s319
      %p323 = scmp.eq.s32.totalorder %s26, 0
      %p324 = por %p322, %p323
      %p325 = scmp.ne.s32.totalorder %s317, %s319
      %p326 = scmp.eq.s32.totalorder %s31, 1
      %p327 = por %p325, %p326
      %p328 = scmp.ne.s32.totalorder %s319, %s320
      %p329 = scmp.eq.s32.totalorder %s31, 0
      %p330 = por %p328, %p329
      %p331 = scmp.ne.s32.totalorder %s319, %s320
      %p332 = scmp.eq.s32.totalorder %s32, 1
      %p333 = por %p331, %p332
      %p335 = scmp.ne.s32.totalorder %s320, %s334
      %p336 = scmp.eq.s32.totalorder %s32, 0
      %p337 = por %p335, %p336
      %s339 = sadd.s32 %s338, 1
      %p342 = scmp.eq.s32.totalorder %s26, 1
      %p343 = scmp.ne.s32.totalorder %s338, %s340
      %p344 = scmp.eq.s32.totalorder %s26, 0
      %p345 = por %p343, %p344
      %p346 = scmp.ne.s32.totalorder %s338, %s340
      %p347 = scmp.eq.s32.totalorder %s31, 1
      %p348 = por %p346, %p347
      %p349 = scmp.ne.s32.totalorder %s340, %s341
      %p350 = scmp.eq.s32.totalorder %s31, 0
      %p351 = por %p349, %p350
      %p352 = scmp.ne.s32.totalorder %s340, %s341
      %p353 = scmp.eq.s32.totalorder %s32, 1
      %p354 = por %p352, %p353
      %p356 = scmp.ne.s32.totalorder %s341, %s355
      %p357 = scmp.eq.s32.totalorder %s32, 0
      %p358 = por %p356, %p357
      %s359 = ssub.s32 %s26, %s33
      %p360 = scmp.eq.s32.totalorder %s359, 0
      %s362 = sadd.s32 %s361, 1
      %s363 = scalar_select %p360, %s361, %s362
      %p366 = pneg %p360
      %p367 = scmp.eq.s32.totalorder %s26, 1
      %p368 = por %p366, %p367
      %p369 = scmp.ne.s32.totalorder %s361, %s364
      %p370 = scmp.eq.s32.totalorder %s26, 0
      %p371 = por %p369, %p370
      %p372 = scmp.ne.s32.totalorder %s361, %s364
      %p373 = scmp.eq.s32.totalorder %s31, 1
      %p374 = por %p372, %p373
      %p375 = scmp.ne.s32.totalorder %s364, %s365
      %p376 = scmp.eq.s32.totalorder %s31, 0
      %p377 = por %p375, %p376
      %p378 = scmp.ne.s32.totalorder %s364, %s365
      %p379 = scmp.eq.s32.totalorder %s32, 1
      %p380 = por %p378, %p379
      %p382 = scmp.ne.s32.totalorder %s365, %s381
      %p383 = scmp.eq.s32.totalorder %s32, 0
      %p384 = por %p382, %p383
      %p385 = scmp.le.s32.totalorder 1, %s26
      %p386 = scmp.lt.s32.totalorder %s26, 3
      %p387 = pnand %p385, %p386
      %p388 = pneg %p387
      // Predicated region
      $region9: #{tpu_custom_call.1} parent=5 // pred_check
        _
      $region10: #{tpu_custom_call.1} parent=5 // pred_check_branch
        %390 = sbr.rel (%p387) target = $region12
      $region11: #{tpu_custom_call.1} parent=5 // pred_region
        %s391 = ssub.s32 %s26, 1
        // Predicated region
        $region13: #{tpu_custom_call.1} parent=11 // pred_check
          %p392 = pneg %p99
        $region14: #{tpu_custom_call.1} parent=11 // pred_check_branch
          %394 = sbr.rel (%p392) target = $region16
        $region15: #{tpu_custom_call.1} parent=11 // pred_region
          _
        $region16: #{tpu_custom_call.1} parent=11 // pred_fallthru
          _
        // Predicated region
        $region17: #{tpu_custom_call.1} parent=11 // pred_check
          %p395 = pneg %p120
        $region18: #{tpu_custom_call.1} parent=11 // pred_check_branch
          %397 = sbr.rel (%p395) target = $region20
        $region19: #{tpu_custom_call.1} parent=11 // pred_region
          _
        $region20: #{tpu_custom_call.1} parent=11 // pred_fallthru
          _
        // Predicated region
        $region21: #{tpu_custom_call.1} parent=11 // pred_check
          %p398 = pneg %p141
        $region22: #{tpu_custom_call.1} parent=11 // pred_check_branch
          %400 = sbr.rel (%p398) target = $region24
        $region23: #{tpu_custom_call.1} parent=11 // pred_region
          _
        $region24: #{tpu_custom_call.1} parent=11 // pred_fallthru
          _
        // Predicated region
        $region25: #{tpu_custom_call.1} parent=11 // pred_check
          %p401 = pneg %p162
        $region26: #{tpu_custom_call.1} parent=11 // pred_check_branch
          %403 = sbr.rel (%p401) target = $region28
        $region27: #{tpu_custom_call.1} parent=11 // pred_region
          %405 = vsyncadd [#allocation3], 0
          %s406 = sshll.u32 %s5, 4
          %s407 = int_to_ptr.hbm [resolvable:$true] %s406
          %s408 = sshll.u32 [#allocation2], 4
          %s409 = int_to_ptr.vmem [resolvable:$true] %s408
          %414 = dma.hbm_to_vmem [thread:$0]  %s407, 256, %s409, [#allocation3], 64, 64, 4
        $region28: #{tpu_custom_call.1} parent=11 // pred_fallthru
          _
        // Predicated region
        $region29: #{tpu_custom_call.1} parent=11 // pred_check
          %p415 = pneg %p183
        $region30: #{tpu_custom_call.1} parent=11 // pred_check_branch
          %417 = sbr.rel (%p415) target = $region32
        $region31: #{tpu_custom_call.1} parent=11 // pred_region
          _
        $region32: #{tpu_custom_call.1} parent=11 // pred_fallthru
          _
        // Predicated region
        $region33: #{tpu_custom_call.1} parent=11 // pred_check
          %p418 = pneg %p204
        $region34: #{tpu_custom_call.1} parent=11 // pred_check_branch
          %420 = sbr.rel (%p418) target = $region36
        $region35: #{tpu_custom_call.1} parent=11 // pred_region
          %422 = vsyncadd [#allocation6], 0
          %s423 = sshll.u32 %s7, 4
          %s424 = int_to_ptr.hbm [resolvable:$true] %s423
          %s425 = sshll.u32 [#allocation5], 4
          %s426 = int_to_ptr.vmem [resolvable:$true] %s425
          %431 = dma.hbm_to_vmem [thread:$0]  %s424, 256, %s426, [#allocation6], 64, 64, 4
        $region36: #{tpu_custom_call.1} parent=11 // pred_fallthru
          _
        // Predicated region
        $region37: #{tpu_custom_call.1} parent=11 // pred_check
          %p432 = pneg %p225
        $region38: #{tpu_custom_call.1} parent=11 // pred_check_branch
          %434 = sbr.rel (%p432) target = $region40
        $region39: #{tpu_custom_call.1} parent=11 // pred_region
          _
        $region40: #{tpu_custom_call.1} parent=11 // pred_fallthru
          _
        // Predicated region
        $region41: #{tpu_custom_call.1} parent=11 // pred_check
          %p435 = pneg %p246
        $region42: #{tpu_custom_call.1} parent=11 // pred_check_branch
          %437 = sbr.rel (%p435) target = $region44
        $region43: #{tpu_custom_call.1} parent=11 // pred_region
          _
        $region44: #{tpu_custom_call.1} parent=11 // pred_fallthru
          _
        // Predicated region
        $region45: #{tpu_custom_call.1} parent=11 // pred_check
          %p438 = pneg %p267
        $region46: #{tpu_custom_call.1} parent=11 // pred_check_branch
          %440 = sbr.rel (%p438) target = $region48
        $region47: #{tpu_custom_call.1} parent=11 // pred_region
          _
        $region48: #{tpu_custom_call.1} parent=11 // pred_fallthru
          _
        // Predicated region
        $region49: #{tpu_custom_call.1} parent=11 // pred_check
          %p441 = pneg %p288
        $region50: #{tpu_custom_call.1} parent=11 // pred_check_branch
          %443 = sbr.rel (%p441) target = $region52
        $region51: #{tpu_custom_call.1} parent=11 // pred_region
          %445 = vsyncadd [#allocation6], 0
          %s446 = sshll.u32 %s11, 4
          %s447 = int_to_ptr.hbm [resolvable:$true] %s446
          %s448 = sshll.u32 [#allocation7], 4
          %s449 = int_to_ptr.vmem [resolvable:$true] %s448
          %454 = dma.hbm_to_vmem [thread:$0]  %s447, 256, %s449, [#allocation6], 64, 64, 4
        $region52: #{tpu_custom_call.1} parent=11 // pred_fallthru
          _
        // Predicated region
        $region53: #{tpu_custom_call.1} parent=11 // pred_check
          %p455 = pneg %p309
        $region54: #{tpu_custom_call.1} parent=11 // pred_check_branch
          %457 = sbr.rel (%p455) target = $region56
        $region55: #{tpu_custom_call.1} parent=11 // pred_region
          _
        $region56: #{tpu_custom_call.1} parent=11 // pred_fallthru
          _
        // Predicated region
        $region57: #{tpu_custom_call.1} parent=11 // pred_check
          %p458 = pneg %p330
        $region58: #{tpu_custom_call.1} parent=11 // pred_check_branch
          %460 = sbr.rel (%p458) target = $region60
        $region59: #{tpu_custom_call.1} parent=11 // pred_region
          _
        $region60: #{tpu_custom_call.1} parent=11 // pred_fallthru
          _
        // Predicated region
        $region61: #{tpu_custom_call.1} parent=11 // pred_check
          %p461 = pneg %p351
        $region62: #{tpu_custom_call.1} parent=11 // pred_check_branch
          %463 = sbr.rel (%p461) target = $region64
        $region63: #{tpu_custom_call.1} parent=11 // pred_region
          _
        $region64: #{tpu_custom_call.1} parent=11 // pred_fallthru
          _
      $region12: #{tpu_custom_call.1} parent=5 // pred_fallthru
        _
      %p464 = scmp.lt.s32.totalorder %s26, 2
      // Predicated region
      $region65: #{tpu_custom_call.1} parent=5 // pred_check
        %p465 = pneg %p464
      $region66: #{tpu_custom_call.1} parent=5 // pred_check_branch
        %467 = sbr.rel (%p465) target = $region68
      $region67: #{tpu_custom_call.1} parent=5 // pred_region
        // Predicated region
        $region69: #{tpu_custom_call.1} parent=67 // pred_check
          %p468 = pneg %p46
        $region70: #{tpu_custom_call.1} parent=67 // pred_check_branch
          %470 = sbr.rel (%p468) target = $region72
        $region71: #{tpu_custom_call.1} parent=67 // pred_region
          %p471 = scmp.lt.s32.totalorder %s26, 1
          %s472 = scalar_select %p471, %s26, 1
          %s473 = smul.addr %s472, 8
          %s474 = scalar_lea.vmem %s0, %s473
        $region72: #{tpu_custom_call.1} parent=67 // pred_fallthru
          _
        // Predicated region
        $region73: #{tpu_custom_call.1} parent=67 // pred_check
          %p475 = pneg %p72
        $region74: #{tpu_custom_call.1} parent=67 // pred_check_branch
          %477 = sbr.rel (%p475) target = $region76
        $region75: #{tpu_custom_call.1} parent=67 // pred_region
          %s478 = smul.u32 8, %s26
          %p479 = scmp.lt.s32.totalorder %s478, 15
          %s480 = scalar_select %p479, %s478, 15
          %s481 = smul.addr %s480, 4
          %s482 = scalar_lea.vmem %s1, %s481
          %s483 = smul.u32 8, %s26
        $region76: #{tpu_custom_call.1} parent=67 // pred_fallthru
          _
      $region68: #{tpu_custom_call.1} parent=5 // pred_fallthru
        _
      %p484 = scmp.le.s32.totalorder 1, %s26
      %p485 = scmp.lt.s32.totalorder %s26, 3
      %p486 = pnand %p484, %p485
      %p487 = pneg %p486
      // Predicated region
      $region77: #{tpu_custom_call.1} parent=5 // pred_check
        _
      $region78: #{tpu_custom_call.1} parent=5 // pred_check_branch
        %489 = sbr.rel (%p486) target = $region80
      $region79: #{tpu_custom_call.1} parent=5 // pred_region
        %s490 = ssub.s32 %s26, 1
        // Predicated region
        $region81: #{tpu_custom_call.1} parent=79 // pred_check
          %p491 = pneg %p162
        $region82: #{tpu_custom_call.1} parent=79 // pred_check_branch
          %493 = sbr.rel (%p491) target = $region84
        $region83: #{tpu_custom_call.1} parent=79 // pred_region
          %495 = dma.done [#allocation3], 256
        $region84: #{tpu_custom_call.1} parent=79 // pred_fallthru
          _
        // Predicated region
        $region85: #{tpu_custom_call.1} parent=79 // pred_check
          %p496 = pneg %p204
        $region86: #{tpu_custom_call.1} parent=79 // pred_check_branch
          %498 = sbr.rel (%p496) target = $region88
        $region87: #{tpu_custom_call.1} parent=79 // pred_region
          %500 = dma.done [#allocation6], 256
        $region88: #{tpu_custom_call.1} parent=79 // pred_fallthru
          _
        // Predicated region
        $region89: #{tpu_custom_call.1} parent=79 // pred_check
          %p501 = pneg %p288
        $region90: #{tpu_custom_call.1} parent=79 // pred_check_branch
          %503 = sbr.rel (%p501) target = $region92
        $region91: #{tpu_custom_call.1} parent=79 // pred_region
          %505 = dma.done [#allocation6], 256
        $region92: #{tpu_custom_call.1} parent=79 // pred_fallthru
          _
        %p506 = scmp.lt.s32.totalorder %s31, 1
        %s507 = scalar_select %p506, %s31, 1
        %s508 = smul.addr %s507, 8
        %s509 = scalar_lea.vmem %s0, %s508
        %p510 = pneg %p52
        %p511 = pneg %p49
        %s512 = smul.u32 8, %s31
        %p513 = scmp.lt.s32.totalorder %s512, 15
        %s514 = scalar_select %p513, %s512, 15
        %s515 = smul.addr %s514, 4
        %s516 = scalar_lea.vmem %s1, %s515
        %p517 = pneg %p78
        %p518 = pneg %p75
        %p519 = pneg %p99
        %p520 = pneg %p96
        %p521 = pneg %p120
        %p522 = pneg %p117
        %p523 = pneg %p141
        %p524 = pneg %p138
        %p525 = pneg %p162
        %p526 = pneg %p159
        %p527 = pneg %p183
        %p528 = pneg %p180
        %p529 = pneg %p204
        %p530 = pneg %p201
        %p531 = pneg %p225
        %p532 = pneg %p222
        %p533 = pneg %p246
        %p534 = pneg %p243
        %p535 = pneg %p267
        %p536 = pneg %p264
        %p537 = pneg %p288
        %p538 = pneg %p285
        %p539 = pneg %p309
        %p540 = pneg %p306
        %p541 = pneg %p330
        %p542 = pneg %p327
        %p543 = pneg %p351
        %p544 = pneg %p348
        %p545 = pneg %p377
        %p546 = pneg %p374
        %s547 = sand.u32 %s364, 1
        %s548 = scalar_lea.sflag [#allocation4], %s547
        %s549 = sand.u32 %s364, 1
        %s550 = smul.addr %s549, 8
        %s551 = scalar_lea.vmem [#allocation8], %s550
        %p552 = scmp.lt.s32.totalorder %s31, 1
        %s553 = scalar_select %p552, %s31, 1
        %s554 = smul.addr %s553, 8
        %s555 = scalar_lea.vmem %s0, %s554
        %s556 = smul.u32 8, %s31
        %p557 = scmp.lt.s32.totalorder %s556, 15
        %s558 = scalar_select %p557, %s556, 15
        %s559 = smul.addr %s558, 4
        %s560 = scalar_lea.vmem %s1, %s559
        %s561 = smul.u32 8, %s31
        %v563 = vld [vmem:[%s560] sm:$0xf]
        %v564 = vld [vmem:[%s560 + $0x4] sm:$0xf]
        %v565 = vld [vmem:[%s560 + $0x8] sm:$0xf]
        %v566 = vld [vmem:[%s560 + $0xc] sm:$0xf]
        %v567 = vld [vmem:[%s560 + $0x10] sm:$0xf]
        %v568 = vld [vmem:[%s560 + $0x14] sm:$0xf]
        %v569 = vld [vmem:[%s560 + $0x18] sm:$0xf]
        %v570 = vld [vmem:[%s560 + $0x1c] sm:$0xf]
        %v571 = vld [vmem:[%s3] sm:$0xf]
        %v572 = vld [vmem:[%s3 + $0x4] sm:$0xf]
        %v573 = vld [vmem:[%s3 + $0x8] sm:$0xf]
        %v574 = vld [vmem:[%s3 + $0xc] sm:$0xf]
        %v575 = vld [vmem:[%s4] sm:$0x1]
        %v577 = vperm.slane %v575, 0
        %v587 = vunpack.c.l.b16 %v563
        %v588 = vunpack.c.l.b16 %v564
        %v589 = vunpack.c.l.b16 %v565
        %v590 = vunpack.c.l.b16 %v566
        %v591 = vunpack.c.l.b16 %v567
        %v592 = vunpack.c.l.b16 %v568
        %v593 = vunpack.c.l.b16 %v569
        %v594 = vunpack.c.l.b16 %v570
        %v595 = vpack.c.b16 %v588, %v587
        %v596 = vpack.c.b16 %v590, %v589
        %v597 = vpack.c.b16 %v592, %v591
        %v598 = vpack.c.b16 %v594, %v593
        %v603 = vunpack.c.l.b16 %v571
        %v604 = vunpack.c.l.b16 %v572
        %v605 = vunpack.c.l.b16 %v573
        %v606 = vunpack.c.l.b16 %v574
        %v607 = vpack.c.b16 %v604, %v603
        %v608 = vpack.c.b16 %v606, %v605
        %vm611 = vcmask 261120
        %v613 = vsel %vm611, %v595, 0
        %v616 = vsel %vm611, %v596, 0
        %v619 = vsel %vm611, %v597, 0
        %v622 = vsel %vm611, %v598, 0
        %624 = vmatpush.bf16.msra.mxu0 0
        %625 = vmatpush.bf16.msra.mxu0 0
        %626 = vmatpush.bf16.msra.mxu0 0
        %627 = vmatpush.bf16.msra.mxu0 0
        %628 = vmatpush.bf16.msra.mxu0 0
        %629 = vmatpush.bf16.msra.mxu0 0
        %630 = vmatpush.bf16.msra.mxu0 %v608
        %631 = vmatpush.bf16.msra.mxu0 %v607
        %632 = vmatmul.bf16.gmra.mxu0 %v613
        %v633 = vpop.f32.mrf.mxu0
        %v634 = vadd.f32 %v577, %v633
        %v635 = vpop.f32.mrf.mxu0
        %v636 = vadd.f32 %v577, %v635
        %637 = vmatmul.bf16.gmra.mxu0 %v616
        %v638 = vpop.f32.mrf.mxu0
        %v639 = vadd.f32 %v577, %v638
        %v640 = vpop.f32.mrf.mxu0
        %v641 = vadd.f32 %v577, %v640
        %642 = vmatmul.bf16.gmra.mxu0 %v619
        %v643 = vpop.f32.mrf.mxu0
        %v644 = vadd.f32 %v577, %v643
        %v645 = vpop.f32.mrf.mxu0
        %v646 = vadd.f32 %v577, %v645
        %647 = vmatmul.bf16.gmra.mxu0 %v622
        %v648 = vpop.f32.mrf.mxu0
        %v649 = vadd.f32 %v577, %v648
        %v650 = vpop.f32.mrf.mxu0
        %v651 = vadd.f32 %v577, %v650
        %652 = vdwg.mxu0
        %v653 = vld [vmem:[#allocation2] sm:$0xf]
        %v654 = vld [vmem:[#allocation2 + $0x4] sm:$0xf]
        %v655 = vld [vmem:[#allocation2 + $0x8] sm:$0xf]
        %v656 = vld [vmem:[#allocation2 + $0xc] sm:$0xf]
        %v657 = vld [vmem:[%s6] sm:$0x1]
        %v659 = vperm.slane %v657, 0
        %v665 = vunpack.c.l.b16 %v653
        %v666 = vunpack.c.l.b16 %v654
        %v667 = vunpack.c.l.b16 %v655
        %v668 = vunpack.c.l.b16 %v656
        %v669 = vpack.c.b16 %v666, %v665
        %v670 = vpack.c.b16 %v668, %v667
        %673 = vmatpush.bf16.msra.mxu0 0
        %674 = vmatpush.bf16.msra.mxu0 0
        %675 = vmatpush.bf16.msra.mxu0 0
        %676 = vmatpush.bf16.msra.mxu0 0
        %677 = vmatpush.bf16.msra.mxu0 0
        %678 = vmatpush.bf16.msra.mxu0 0
        %679 = vmatpush.bf16.msra.mxu0 %v670
        %680 = vmatpush.bf16.msra.mxu0 %v669
        %681 = vmatmul.bf16.gmra.mxu0 %v613
        %v682 = vpop.f32.mrf.mxu0
        %v683 = vadd.f32 %v659, %v682
        %v684 = vpop.f32.mrf.mxu0
        %v685 = vadd.f32 %v659, %v684
        %686 = vmatmul.bf16.gmra.mxu0 %v616
        %v687 = vpop.f32.mrf.mxu0
        %v688 = vadd.f32 %v659, %v687
        %v689 = vpop.f32.mrf.mxu0
        %v690 = vadd.f32 %v659, %v689
        %691 = vmatmul.bf16.gmra.mxu0 %v619
        %v692 = vpop.f32.mrf.mxu0
        %v693 = vadd.f32 %v659, %v692
        %v694 = vpop.f32.mrf.mxu0
        %v695 = vadd.f32 %v659, %v694
        %696 = vmatmul.bf16.gmra.mxu0 %v622
        %v697 = vpop.f32.mrf.mxu0
        %v698 = vadd.f32 %v659, %v697
        %v699 = vpop.f32.mrf.mxu0
        %v700 = vadd.f32 %v659, %v699
        %701 = vdwg.mxu0
        %v702 = vld [vmem:[%s555] sm:$0xff]
        %v703 = vperm.slane %v702, 0
        %v704 = vlaneseq
        %v705 = vshrl.u32 %v704, 7
        %707 = vset.pattern.permute.xlu0 %v705
        %708 = vperm.xlu0 %707, %v703
        %v709 = vpop.permute.xlu0 %708
        %v710 = vperm.slane %v702, 1
        %v711 = vlaneseq
        %v712 = vshrl.u32 %v711, 7
        %714 = vset.pattern.permute.xlu0 %v712
        %715 = vperm.xlu0 %714, %v710
        %v716 = vpop.permute.xlu0 %715
        %v717 = vperm.slane %v702, 2
        %v718 = vlaneseq
        %v719 = vshrl.u32 %v718, 7
        %721 = vset.pattern.permute.xlu0 %v719
        %722 = vperm.xlu0 %721, %v717
        %v723 = vpop.permute.xlu0 %722
        %v724 = vperm.slane %v702, 3
        %v725 = vlaneseq
        %v726 = vshrl.u32 %v725, 7
        %728 = vset.pattern.permute.xlu0 %v726
        %729 = vperm.xlu0 %728, %v724
        %v730 = vpop.permute.xlu0 %729
        %v731 = vperm.slane %v702, 4
        %v732 = vlaneseq
        %v733 = vshrl.u32 %v732, 7
        %735 = vset.pattern.permute.xlu0 %v733
        %736 = vperm.xlu0 %735, %v731
        %v737 = vpop.permute.xlu0 %736
        %v738 = vperm.slane %v702, 5
        %v739 = vlaneseq
        %v740 = vshrl.u32 %v739, 7
        %742 = vset.pattern.permute.xlu0 %v740
        %743 = vperm.xlu0 %742, %v738
        %v744 = vpop.permute.xlu0 %743
        %v745 = vperm.slane %v702, 6
        %v746 = vlaneseq
        %v747 = vshrl.u32 %v746, 7
        %749 = vset.pattern.permute.xlu0 %v747
        %750 = vperm.xlu0 %749, %v745
        %v751 = vpop.permute.xlu0 %750
        %v752 = vperm.slane %v702, 7
        %v753 = vlaneseq
        %v754 = vshrl.u32 %v753, 7
        %756 = vset.pattern.permute.xlu0 %v754
        %757 = vperm.xlu0 %756, %v752
        %v758 = vpop.permute.xlu0 %757
        %vm759 = vcmp.gt.f32.partialorder %v709, 0.5
        %vm760 = vcmp.gt.f32.partialorder %v716, 0.5
        %vm761 = vcmp.gt.f32.partialorder %v723, 0.5
        %vm762 = vcmp.gt.f32.partialorder %v730, 0.5
        %vm763 = vcmp.gt.f32.partialorder %v737, 0.5
        %vm764 = vcmp.gt.f32.partialorder %v744, 0.5
        %vm765 = vcmp.gt.f32.partialorder %v751, 0.5
        %vm766 = vcmp.gt.f32.partialorder %v758, 0.5
        %v767 = vsel %vm759, 1, 0
        %v768 = vsel %vm760, 1, 0
        %v769 = vsel %vm761, 1, 0
        %v770 = vsel %vm762, 1, 0
        %v771 = vsel %vm763, 1, 0
        %v772 = vsel %vm764, 1, 0
        %v773 = vsel %vm765, 1, 0
        %v774 = vsel %vm766, 1, 0
        %vm775 = vcmp.eq.s32.totalorder %v767, 1
        %vm776 = vcmp.eq.s32.totalorder %v768, 1
        %vm777 = vcmp.eq.s32.totalorder %v769, 1
        %vm778 = vcmp.eq.s32.totalorder %v770, 1
        %vm779 = vcmp.eq.s32.totalorder %v771, 1
        %vm780 = vcmp.eq.s32.totalorder %v772, 1
        %vm781 = vcmp.eq.s32.totalorder %v773, 1
        %vm782 = vcmp.eq.s32.totalorder %v774, 1
        %v783 = vsel %vm775, -1e+18, %v634
        %v784 = vsel %vm776, -1e+18, %v636
        %v785 = vsel %vm777, -1e+18, %v639
        %v786 = vsel %vm778, -1e+18, %v641
        %v787 = vsel %vm779, -1e+18, %v644
        %v788 = vsel %vm780, -1e+18, %v646
        %v789 = vsel %vm781, -1e+18, %v649
        %v790 = vsel %vm782, -1e+18, %v651
        %vm791 = vcmask 31744
        %v792 = vsel %vm791, %v783, -inf
        %v793 = vrot.slane %v792, 4
        %v794 = vmax.f32 %v792, %v793
        %v795 = vrot.slane %v794, 2
        %v796 = vmax.f32 %v794, %v795
        %v797 = vrot.slane %v796, 1
        %v798 = vmax.f32 %v796, %v797
        %v799 = vsel %vm791, %v784, -inf
        %v800 = vrot.slane %v799, 4
        %v801 = vmax.f32 %v799, %v800
        %v802 = vrot.slane %v801, 2
        %v803 = vmax.f32 %v801, %v802
        %v804 = vrot.slane %v803, 1
        %v805 = vmax.f32 %v803, %v804
        %v806 = vsel %vm791, %v785, -inf
        %v807 = vrot.slane %v806, 4
        %v808 = vmax.f32 %v806, %v807
        %v809 = vrot.slane %v808, 2
        %v810 = vmax.f32 %v808, %v809
        %v811 = vrot.slane %v810, 1
        %v812 = vmax.f32 %v810, %v811
        %v813 = vsel %vm791, %v786, -inf
        %v814 = vrot.slane %v813, 4
        %v815 = vmax.f32 %v813, %v814
        %v816 = vrot.slane %v815, 2
        %v817 = vmax.f32 %v815, %v816
        %v818 = vrot.slane %v817, 1
        %v819 = vmax.f32 %v817, %v818
        %v820 = vsel %vm791, %v787, -inf
        %v821 = vrot.slane %v820, 4
        %v822 = vmax.f32 %v820, %v821
        %v823 = vrot.slane %v822, 2
        %v824 = vmax.f32 %v822, %v823
        %v825 = vrot.slane %v824, 1
        %v826 = vmax.f32 %v824, %v825
        %v827 = vsel %vm791, %v788, -inf
        %v828 = vrot.slane %v827, 4
        %v829 = vmax.f32 %v827, %v828
        %v830 = vrot.slane %v829, 2
        %v831 = vmax.f32 %v829, %v830
        %v832 = vrot.slane %v831, 1
        %v833 = vmax.f32 %v831, %v832
        %v834 = vsel %vm791, %v789, -inf
        %v835 = vrot.slane %v834, 4
        %v836 = vmax.f32 %v834, %v835
        %v837 = vrot.slane %v836, 2
        %v838 = vmax.f32 %v836, %v837
        %v839 = vrot.slane %v838, 1
        %v840 = vmax.f32 %v838, %v839
        %v841 = vsel %vm791, %v790, -inf
        %v842 = vrot.slane %v841, 4
        %v843 = vmax.f32 %v841, %v842
        %v844 = vrot.slane %v843, 2
        %v845 = vmax.f32 %v843, %v844
        %v846 = vrot.slane %v845, 1
        %v847 = vmax.f32 %v845, %v846
        %v848 = vsub.f32 %v783, %v798
        %v849 = vsub.f32 %v784, %v805
        %v850 = vsub.f32 %v785, %v812
        %v851 = vsub.f32 %v786, %v819
        %v852 = vsub.f32 %v787, %v826
        %v853 = vsub.f32 %v788, %v833
        %v854 = vsub.f32 %v789, %v840
        %v855 = vsub.f32 %v790, %v847
        %v856 = vmul.f32 %v848, 1.442695
        %v857 = vpow.pop %v856
        %v858 = vmul.f32 %v849, 1.442695
        %v859 = vpow.pop %v858
        %v860 = vmul.f32 %v850, 1.442695
        %v861 = vpow.pop %v860
        %v862 = vmul.f32 %v851, 1.442695
        %v863 = vpow.pop %v862
        %v864 = vmul.f32 %v852, 1.442695
        %v865 = vpow.pop %v864
        %v866 = vmul.f32 %v853, 1.442695
        %v867 = vpow.pop %v866
        %v868 = vmul.f32 %v854, 1.442695
        %v869 = vpow.pop %v868
        %v870 = vmul.f32 %v855, 1.442695
        %v871 = vpow.pop %v870
        %v872 = vsel %vm791, %v857, 0.0
        %v873 = vrot.slane %v872, 4
        %v874 = vadd.f32 %v872, %v873
        %v875 = vrot.slane %v874, 2
        %v876 = vadd.f32 %v874, %v875
        %v877 = vrot.slane %v876, 1
        %v878 = vadd.f32 %v876, %v877
        %v879 = vsel %vm791, %v859, 0.0
        %v880 = vrot.slane %v879, 4
        %v881 = vadd.f32 %v879, %v880
        %v882 = vrot.slane %v881, 2
        %v883 = vadd.f32 %v881, %v882
        %v884 = vrot.slane %v883, 1
        %v885 = vadd.f32 %v883, %v884
        %v886 = vsel %vm791, %v861, 0.0
        %v887 = vrot.slane %v886, 4
        %v888 = vadd.f32 %v886, %v887
        %v889 = vrot.slane %v888, 2
        %v890 = vadd.f32 %v888, %v889
        %v891 = vrot.slane %v890, 1
        %v892 = vadd.f32 %v890, %v891
        %v893 = vsel %vm791, %v863, 0.0
        %v894 = vrot.slane %v893, 4
        %v895 = vadd.f32 %v893, %v894
        %v896 = vrot.slane %v895, 2
        %v897 = vadd.f32 %v895, %v896
        %v898 = vrot.slane %v897, 1
        %v899 = vadd.f32 %v897, %v898
        %v900 = vsel %vm791, %v865, 0.0
        %v901 = vrot.slane %v900, 4
        %v902 = vadd.f32 %v900, %v901
        %v903 = vrot.slane %v902, 2
        %v904 = vadd.f32 %v902, %v903
        %v905 = vrot.slane %v904, 1
        %v906 = vadd.f32 %v904, %v905
        %v907 = vsel %vm791, %v867, 0.0
        %v908 = vrot.slane %v907, 4
        %v909 = vadd.f32 %v907, %v908
        %v910 = vrot.slane %v909, 2
        %v911 = vadd.f32 %v909, %v910
        %v912 = vrot.slane %v911, 1
        %v913 = vadd.f32 %v911, %v912
        %v914 = vsel %vm791, %v869, 0.0
        %v915 = vrot.slane %v914, 4
        %v916 = vadd.f32 %v914, %v915
        %v917 = vrot.slane %v916, 2
        %v918 = vadd.f32 %v916, %v917
        %v919 = vrot.slane %v918, 1
        %v920 = vadd.f32 %v918, %v919
        %v921 = vsel %vm791, %v871, 0.0
        %v922 = vrot.slane %v921, 4
        %v923 = vadd.f32 %v921, %v922
        %v924 = vrot.slane %v923, 2
        %v925 = vadd.f32 %v923, %v924
        %v926 = vrot.slane %v925, 1
        %v927 = vadd.f32 %v925, %v926
        %v928 = vrcp.pop %v878
        %v929 = vrcp.pop %v885
        %v930 = vrcp.pop %v892
        %v931 = vrcp.pop %v899
        %v932 = vrcp.pop %v906
        %v933 = vrcp.pop %v913
        %v934 = vrcp.pop %v920
        %v935 = vrcp.pop %v927
        %v936 = vmul.f32 %v857, %v928
        %v937 = vmul.f32 %v859, %v929
        %v938 = vmul.f32 %v861, %v930
        %v939 = vmul.f32 %v863, %v931
        %v940 = vmul.f32 %v865, %v932
        %v941 = vmul.f32 %v867, %v933
        %v942 = vmul.f32 %v869, %v934
        %v943 = vmul.f32 %v871, %v935
        %v944 = vld [vmem:[%s2] sm:$0xf]
        %v946 = vsel %vm791, %v936, 0
        %v949 = vsel %vm791, %v937, 0
        %v952 = vsel %vm791, %v938, 0
        %v955 = vsel %vm791, %v939, 0
        %v958 = vsel %vm791, %v940, 0
        %v961 = vsel %vm791, %v941, 0
        %v964 = vsel %vm791, %v942, 0
        %v967 = vsel %vm791, %v943, 0
        %vm969 = vcmask 1043456
        %v971 = vsel %vm969, %v944, 0
        %973 = vmatpush.msra.mxu0 0.0
        %974 = vmatpush.msra.mxu0 0.0
        %975 = vmatpush.msra.mxu0 0.0
        %976 = vmatpush.msra.mxu0 0.0
        %977 = vmatpush.msra.mxu0 0.0
        %978 = vmatpush.msra.mxu0 0.0
        %979 = vmatpush.msra.mxu0 0.0
        %980 = vmatpush.msra.mxu0 0.0
        %981 = vmatpush.msra.mxu0 0.0
        %982 = vmatpush.msra.mxu0 0.0
        %983 = vmatpush.msra.mxu0 0.0
        %984 = vmatpush.msra.mxu0 0.0
        %985 = vmatpush.msra.mxu0 0.0
        %986 = vmatpush.msra.mxu0 0.0
        %987 = vmatpush.msra.mxu0 0.0
        %988 = vmatpush.msra.mxu0 %v971
        %989 = vmatmul.f32.gmra.mxu0 %v946
        %v990 = vpop.f32.mrf.mxu0
        %v991 = vadd.f32 0.0, %v990
        %992 = vmatmul.f32.gmra.mxu0 %v949
        %v993 = vpop.f32.mrf.mxu0
        %v994 = vadd.f32 0.0, %v993
        %995 = vmatmul.f32.gmra.mxu0 %v952
        %v996 = vpop.f32.mrf.mxu0
        %v997 = vadd.f32 0.0, %v996
        %998 = vmatmul.f32.gmra.mxu0 %v955
        %v999 = vpop.f32.mrf.mxu0
        %v1000 = vadd.f32 0.0, %v999
        %1001 = vmatmul.f32.gmra.mxu0 %v958
        %v1002 = vpop.f32.mrf.mxu0
        %v1003 = vadd.f32 0.0, %v1002
        %1004 = vmatmul.f32.gmra.mxu0 %v961
        %v1005 = vpop.f32.mrf.mxu0
        %v1006 = vadd.f32 0.0, %v1005
        %1007 = vmatmul.f32.gmra.mxu0 %v964
        %v1008 = vpop.f32.mrf.mxu0
        %v1009 = vadd.f32 0.0, %v1008
        %1010 = vmatmul.f32.gmra.mxu0 %v967
        %v1011 = vpop.f32.mrf.mxu0
        %v1012 = vadd.f32 0.0, %v1011
        %1013 = vdwg.mxu0
        %v1014 = vmul.f32 %v991, %v683
        %v1015 = vmul.f32 %v994, %v685
        %v1016 = vmul.f32 %v997, %v688
        %v1017 = vmul.f32 %v1000, %v690
        %v1018 = vmul.f32 %v1003, %v693
        %v1019 = vmul.f32 %v1006, %v695
        %v1020 = vmul.f32 %v1009, %v698
        %v1021 = vmul.f32 %v1012, %v700
        %v1022 = vsel %vm611, %v1014, 0.0
        %v1023 = vrot.slane %v1022, 4
        %v1024 = vadd.f32 %v1022, %v1023
        %v1025 = vrot.slane %v1024, 2
        %v1026 = vadd.f32 %v1024, %v1025
        %v1027 = vrot.slane %v1026, 1
        %v1028 = vadd.f32 %v1026, %v1027
        %v1029 = vsel %vm611, %v1015, 0.0
        %v1030 = vrot.slane %v1029, 4
        %v1031 = vadd.f32 %v1029, %v1030
        %v1032 = vrot.slane %v1031, 2
        %v1033 = vadd.f32 %v1031, %v1032
        %v1034 = vrot.slane %v1033, 1
        %v1035 = vadd.f32 %v1033, %v1034
        %v1036 = vsel %vm611, %v1016, 0.0
        %v1037 = vrot.slane %v1036, 4
        %v1038 = vadd.f32 %v1036, %v1037
        %v1039 = vrot.slane %v1038, 2
        %v1040 = vadd.f32 %v1038, %v1039
        %v1041 = vrot.slane %v1040, 1
        %v1042 = vadd.f32 %v1040, %v1041
        %v1043 = vsel %vm611, %v1017, 0.0
        %v1044 = vrot.slane %v1043, 4
        %v1045 = vadd.f32 %v1043, %v1044
        %v1046 = vrot.slane %v1045, 2
        %v1047 = vadd.f32 %v1045, %v1046
        %v1048 = vrot.slane %v1047, 1
        %v1049 = vadd.f32 %v1047, %v1048
        %v1050 = vsel %vm611, %v1018, 0.0
        %v1051 = vrot.slane %v1050, 4
        %v1052 = vadd.f32 %v1050, %v1051
        %v1053 = vrot.slane %v1052, 2
        %v1054 = vadd.f32 %v1052, %v1053
        %v1055 = vrot.slane %v1054, 1
        %v1056 = vadd.f32 %v1054, %v1055
        %v1057 = vsel %vm611, %v1019, 0.0
        %v1058 = vrot.slane %v1057, 4
        %v1059 = vadd.f32 %v1057, %v1058
        %v1060 = vrot.slane %v1059, 2
        %v1061 = vadd.f32 %v1059, %v1060
        %v1062 = vrot.slane %v1061, 1
        %v1063 = vadd.f32 %v1061, %v1062
        %v1064 = vsel %vm611, %v1020, 0.0
        %v1065 = vrot.slane %v1064, 4
        %v1066 = vadd.f32 %v1064, %v1065
        %v1067 = vrot.slane %v1066, 2
        %v1068 = vadd.f32 %v1066, %v1067
        %v1069 = vrot.slane %v1068, 1
        %v1070 = vadd.f32 %v1068, %v1069
        %v1071 = vsel %vm611, %v1021, 0.0
        %v1072 = vrot.slane %v1071, 4
        %v1073 = vadd.f32 %v1071, %v1072
        %v1074 = vrot.slane %v1073, 2
        %v1075 = vadd.f32 %v1073, %v1074
        %v1076 = vrot.slane %v1075, 1
        %v1077 = vadd.f32 %v1075, %v1076
        %v1078 = vpack.c.bf16 %v1028, %v1028
        %v1079 = vpack.c.bf16 %v1035, %v1035
        %v1080 = vpack.c.bf16 %v1042, %v1042
        %v1081 = vpack.c.bf16 %v1049, %v1049
        %v1082 = vpack.c.bf16 %v1056, %v1056
        %v1083 = vpack.c.bf16 %v1063, %v1063
        %v1084 = vpack.c.bf16 %v1070, %v1070
        %v1085 = vpack.c.bf16 %v1077, %v1077
        %v1086 = vld [vmem:[#allocation5] sm:$0xf]
        %v1087 = vld [vmem:[#allocation5 + $0x4] sm:$0xf]
        %v1088 = vld [vmem:[#allocation5 + $0x8] sm:$0xf]
        %v1089 = vld [vmem:[#allocation5 + $0xc] sm:$0xf]
        %v1090 = vld [vmem:[%s8] sm:$0x1]
        %v1092 = vperm.slane %v1090, 0
        %v1102 = vunpack.c.l.b16 %v1078
        %v1103 = vunpack.c.l.b16 %v1079
        %v1104 = vunpack.c.l.b16 %v1080
        %v1105 = vunpack.c.l.b16 %v1081
        %v1106 = vunpack.c.l.b16 %v1082
        %v1107 = vunpack.c.l.b16 %v1083
        %v1108 = vunpack.c.l.b16 %v1084
        %v1109 = vunpack.c.l.b16 %v1085
        %vm1110 = vcmask 1041409
        %v1111 = vsel %vm1110, %v1103, %v1102
        %vm1112 = vcmask 1042434
        %v1113 = vsel %vm1112, %v1104, %v1111
        %vm1114 = vcmask 1043459
        %v1115 = vsel %vm1114, %v1105, %v1113
        %vm1116 = vcmask 1044484
        %v1117 = vsel %vm1116, %v1106, %v1115
        %vm1118 = vcmask 1045509
        %v1119 = vsel %vm1118, %v1107, %v1117
        %vm1120 = vcmask 1046534
        %v1121 = vsel %vm1120, %v1108, %v1119
        %vm1122 = vcmask 1047559
        %v1123 = vsel %vm1122, %v1109, %v1121
        %v1124 = vpack.c.b16 %v1123, %v1123
        %v1129 = vunpack.c.l.b16 %v1086
        %v1130 = vunpack.c.l.b16 %v1087
        %v1131 = vunpack.c.l.b16 %v1088
        %v1132 = vunpack.c.l.b16 %v1089
        %v1133 = vpack.c.b16 %v1130, %v1129
        %v1134 = vpack.c.b16 %v1132, %v1131
        %v1138 = vsel %vm611, %v1124, 0
        %1140 = vmatpush.bf16.msra.mxu0 0
        %1141 = vmatpush.bf16.msra.mxu0 0
        %1142 = vmatpush.bf16.msra.mxu0 0
        %1143 = vmatpush.bf16.msra.mxu0 0
        %1144 = vmatpush.bf16.msra.mxu0 0
        %1145 = vmatpush.bf16.msra.mxu0 0
        %1146 = vmatpush.bf16.msra.mxu0 %v1134
        %1147 = vmatpush.bf16.msra.mxu0 %v1133
        %1148 = vmatmul.bf16.gmra.mxu0 %v1138
        %v1149 = vpop.f32.mrf.mxu0
        %v1150 = vadd.f32 %v1092, %v1149
        %v1151 = vpop.f32.mrf.mxu0
        %1152 = vdwg.mxu0
        %v1153 = vsel %vm611, %v1150, 0.0
        %1154 = vadd.xlane.f32.xlu0 %v1153
        %v1155 = vpop.xlane.xlu0 %1154
        %v1156 = vrcp.pop 32.0
        %v1157 = vmul.f32 32.0, %v1156
        %v1158 = vsub.f32 1.0, %v1157
        %v1159 = vmul.f32 %v1156, %v1158
        %v1160 = vadd.f32 %v1156, %v1159
        %vm1161 = vweird.f32 %v1156
        %v1162 = vsel %vm1161, %v1156, %v1160
        %v1163 = vmul.f32 %v1155, %v1162
        %v1164 = vsub.f32 %v1150, %v1163
        %v1165 = vmul.f32 %v1164, %v1164
        %v1166 = vsel %vm611, %v1165, 0.0
        %1167 = vadd.xlane.f32.xlu0 %v1166
        %v1168 = vpop.xlane.xlu0 %1167
        %v1169 = vmul.f32 %v1168, %v1162
        %v1170 = vadd.f32 %v1169, 1e-06
        %v1171 = vrsqrt.pop %v1170
        %v1172 = vmul.f32 %v1171, %v1170
        %v1173 = vmul.f32 %v1172, %v1171
        %v1174 = vmul.f32 0.5, %v1173
        %v1175 = vsub.f32 1.5, %v1174
        %v1176 = vmul.f32 %v1171, %v1175
        %vm1177 = vweird.f32 %v1170
        %vm1178 = vweird.f32 %v1171
        %vm1179 = vmor %vm1177, %vm1178
        %v1180 = vsel %vm1179, %v1171, %v1176
        %v1181 = vmul.f32 %v1164, %v1180
        %v1182 = vld [vmem:[%s9] sm:$0x1]
        %v1184 = vperm.slane %v1182, 0
        %v1186 = vmul.f32 %v1181, %v1184
        %v1187 = vld [vmem:[%s10] sm:$0x1]
        %v1189 = vperm.slane %v1187, 0
        %v1191 = vadd.f32 %v1186, %v1189
        %v1192 = vpack.c.bf16 %v1191, %v1191
        %v1193 = vld [vmem:[#allocation7] sm:$0xf]
        %v1194 = vld [vmem:[#allocation7 + $0x4] sm:$0xf]
        %v1195 = vld [vmem:[#allocation7 + $0x8] sm:$0xf]
        %v1196 = vld [vmem:[#allocation7 + $0xc] sm:$0xf]
        %v1197 = vld [vmem:[%s12] sm:$0x1]
        %v1199 = vperm.slane %v1197, 0
        %v1205 = vunpack.c.l.b16 %v1193
        %v1206 = vunpack.c.l.b16 %v1194
        %v1207 = vunpack.c.l.b16 %v1195
        %v1208 = vunpack.c.l.b16 %v1196
        %v1209 = vpack.c.b16 %v1206, %v1205
        %v1210 = vpack.c.b16 %v1208, %v1207
        %v1214 = vsel %vm611, %v1192, 0
        %1216 = vmatpush.bf16.msra.mxu0 0
        %1217 = vmatpush.bf16.msra.mxu0 0
        %1218 = vmatpush.bf16.msra.mxu0 0
        %1219 = vmatpush.bf16.msra.mxu0 0
        %1220 = vmatpush.bf16.msra.mxu0 0
        %1221 = vmatpush.bf16.msra.mxu0 0
        %1222 = vmatpush.bf16.msra.mxu0 %v1210
        %1223 = vmatpush.bf16.msra.mxu0 %v1209
        %1224 = vmatmul.bf16.gmra.mxu0 %v1214
        %v1225 = vpop.f32.mrf.mxu0
        %v1226 = vadd.f32 %v1199, %v1225
        %v1227 = vpop.f32.mrf.mxu0
        %1228 = vdwg.mxu0
        %v1229 = vmul.f32 %v1226, 0.5
        %v1230 = vmul.f32 %v1226, 0.044715
        %v1231 = vmul.f32 %v1230, %v1226
        %v1232 = vmul.f32 %v1231, %v1226
        %v1233 = vadd.f32 %v1226, %v1232
        %v1234 = vmul.f32 %v1233, 0.7978846
        %v1235 = vtanh.pop %v1234
        %v1236 = vadd.f32 %v1235, 1.0
        %v1237 = vmul.f32 %v1229, %v1236
        %v1238 = vpack.c.bf16 %v1237, %v1237
        %v1239 = vld [vmem:[%s13] sm:$0xf]
        %v1240 = vld [vmem:[%s13 + $0x4] sm:$0xf]
        %v1241 = vld [vmem:[%s13 + $0x8] sm:$0xf]
        %v1242 = vld [vmem:[%s13 + $0xc] sm:$0xf]
        %v1243 = vld [vmem:[%s13 + $0x10] sm:$0xf]
        %v1244 = vld [vmem:[%s13 + $0x14] sm:$0xf]
        %v1245 = vld [vmem:[%s13 + $0x18] sm:$0xf]
        %v1246 = vld [vmem:[%s13 + $0x1c] sm:$0xf]
        %v1247 = vld [vmem:[%s14] sm:$0x1]
        %v1249 = vperm.slane %v1247, 0
        %v1259 = vunpack.c.l.b16 %v1239
        %v1260 = vunpack.c.l.b16 %v1240
        %v1261 = vunpack.c.l.b16 %v1241
        %v1262 = vunpack.c.l.b16 %v1242
        %v1263 = vunpack.c.l.b16 %v1243
        %v1264 = vunpack.c.l.b16 %v1244
        %v1265 = vunpack.c.l.b16 %v1245
        %v1266 = vunpack.c.l.b16 %v1246
        %v1267 = vpack.c.b16 %v1260, %v1259
        %v1268 = vpack.c.b16 %v1262, %v1261
        %v1269 = vpack.c.b16 %v1264, %v1263
        %v1270 = vpack.c.b16 %v1266, %v1265
        %vm1275 = vcmask 523264
        %v1277 = vsel %vm1275, %v1238, 0
        %1279 = vmatpush.bf16.msra.mxu0 0
        %1280 = vmatpush.bf16.msra.mxu0 0
        %1281 = vmatpush.bf16.msra.mxu0 0
        %1282 = vmatpush.bf16.msra.mxu0 0
        %1283 = vmatpush.bf16.msra.mxu0 %v1270
        %1284 = vmatpush.bf16.msra.mxu0 %v1269
        %1285 = vmatpush.bf16.msra.mxu0 %v1268
        %1286 = vmatpush.bf16.msra.mxu0 %v1267
        %1287 = vmatmul.bf16.gmra.mxu0 %v1277
        %v1288 = vpop.f32.mrf.mxu0
        %v1289 = vadd.f32 %v1249, %v1288
        %v1290 = vpop.f32.mrf.mxu0
        %1291 = vdwg.mxu0
        %v1292 = vadd.f32 %v1289, %v1150
        %1293 = vst.msk [vmem:[%s551] sm:$0xff] %vm611, %v1292
        %s1294 = sand.u32 %s364, 1
        %s1295 = scalar_lea.sflag [#allocation4], %s1294
        %s1296 = sand.u32 %s364, 1
        %s1297 = smul.addr %s1296, 8
        %s1298 = scalar_lea.vmem [#allocation8], %s1297
        // Predicated region
        $region93: #{tpu_custom_call.1} parent=79 // pred_check
          %p1299 = pneg %p374
        $region94: #{tpu_custom_call.1} parent=79 // pred_check_branch
          %1301 = sbr.rel (%p1299) target = $region96
        $region95: #{tpu_custom_call.1} parent=79 // pred_region
          %1303 = vsyncadd %s1295, 0
          %s1304 = smul.addr %s31, 8
          %s1305 = scalar_lea.hbm %s15, %s1304
          %s1307 = sshll.u32 %s1298, 4
          %s1308 = int_to_ptr.vmem [resolvable:$true] %s1307
          %s1309 = sshll.u32 %s1305, 4
          %s1310 = int_to_ptr.hbm [resolvable:$true] %s1309
          %1312 = dma.vmem_to_hbm [thread:$0]  %s1308, 128, %s1310, %s1295
        $region96: #{tpu_custom_call.1} parent=79 // pred_fallthru
          _
      $region80: #{tpu_custom_call.1} parent=5 // pred_fallthru
        _
      %p1313 = scmp.le.s32.totalorder 2, %s26
      // Predicated region
      $region97: #{tpu_custom_call.1} parent=5 // pred_check
        %p1314 = pneg %p1313
      $region98: #{tpu_custom_call.1} parent=5 // pred_check_branch
        %1316 = sbr.rel (%p1314) target = $region100
      $region99: #{tpu_custom_call.1} parent=5 // pred_region
        %s1317 = ssub.s32 %s26, 2
        // Predicated region
        $region101: #{tpu_custom_call.1} parent=99 // pred_check
          %p1318 = pneg %p380
        $region102: #{tpu_custom_call.1} parent=99 // pred_check_branch
          %1320 = sbr.rel (%p1318) target = $region104
        $region103: #{tpu_custom_call.1} parent=99 // pred_region
          %s1321 = sand.u32 %s365, 1
          %s1322 = scalar_lea.sflag [#allocation4], %s1321
          %s1323 = sand.u32 %s365, 1
          %s1324 = smul.addr %s1323, 8
          %s1325 = scalar_lea.vmem [#allocation8], %s1324
          %1327 = dma.done %s1322, 128
        $region104: #{tpu_custom_call.1} parent=99 // pred_fallthru
          _
      $region100: #{tpu_custom_call.1} parent=5 // pred_fallthru
        _
    $region6: #{tpu_custom_call.1} parent=1 // loop_footer
      %s30 = sadd.s32 1, %s26
    $region7: #{tpu_custom_call.1} parent=1 // loop_footer_branch
      %25 = sbr.rel target = $region3
    $region8: #{tpu_custom_call.1} parent=1 // loop_exit
      _
    %1328 = vsyncpa [#allocation3], 1
    %s1329 = scalar_lea.sflag [#allocation3], 1
    %1330 = vsyncpa %s1329, 1
    %1331 = vsyncpa [#allocation6], 1
    %1332 = vsyncpa [#allocation4], 1
    %s1333 = scalar_lea.sflag [#allocation4], 1
    %1334 = vsyncpa %s1333, 1

</llo_original>
